<compile_context>
chip_gen: v7x
topology: tpu7x:2x2x1
jax: 0.10.0
libtpu: 0.0.40
codegen_flags: <defaults>
</compile_context>

<pallas_src>
import functools
import math

import numpy as np
import jax
import jax.numpy as jnp
from jax import lax
from jax.experimental import pallas as pl
from jax.experimental.pallas import tpu as pltpu


# ----------------------------- config ---------------------------------------
class Cfg:
    hidden_size = 256
    num_attention_heads = 4
    q_lora_rank = 128           # low-rank q path (q_a_proj -> RMSNorm -> q_b_proj)
    kv_lora_rank = 128
    qk_nope_head_dim = 64
    qk_rope_head_dim = 32
    v_head_dim = 64
    rope_theta = 10000.0
    rope_scaling = None
    attention_dropout = 0.0
    rms_norm_eps = 1e-6

    @property
    def q_head_dim(self):
        return self.qk_nope_head_dim + self.qk_rope_head_dim


def yarn_get_mscale(scale=1, mscale=1):
    if scale <= 1:
        return 1.0
    return 0.1 * mscale * math.log(scale) + 1.0


def compute_softmax_scale(cfg: Cfg):
    scale = cfg.q_head_dim ** (-0.5)
    if cfg.rope_scaling is not None:
        mscale_all_dim = cfg.rope_scaling.get("mscale_all_dim", 0)
        factor = cfg.rope_scaling["factor"]
        if mscale_all_dim:
            m = yarn_get_mscale(factor, mscale_all_dim)
            scale = scale * m * m
    return scale


# ----------------------------- RoPE (JAX wrapper) ----------------------------
# RoPE interleave permutation + rotate_half and the head split/transposes are
# pure layout ops; they stay in the JAX wrapper.
def rotate_half(x):
    half = x.shape[-1] // 2
    return jnp.concatenate([-x[..., half:], x[..., :half]], axis=-1)


def apply_rotary_pos_emb(q, k, cos, sin, unsqueeze_dim=1):
    cos = jnp.expand_dims(cos, unsqueeze_dim)
    sin = jnp.expand_dims(sin, unsqueeze_dim)

    def _interleave(x):
        b, h, s, d = x.shape
        return x.reshape(b, h, s, d // 2, 2).swapaxes(-1, -2).reshape(b, h, s, d)

    q = _interleave(q)
    k = _interleave(k)
    q_embed = q * cos + rotate_half(q) * sin
    k_embed = k * cos + rotate_half(k) * sin
    return q_embed, k_embed


def make_rotary_embedding(batch, seq, dim, theta):
    inv_freq = 1.0 / (theta ** (jnp.arange(0, dim, 2, dtype=jnp.float32) / dim))
    t = jnp.arange(seq, dtype=jnp.float32)
    freqs = jnp.einsum("s,d->sd", t, inv_freq)
    emb = jnp.concatenate([freqs, freqs], axis=-1)        # (S, dim)
    cos = jnp.broadcast_to(jnp.cos(emb)[None], (batch, seq, dim))
    sin = jnp.broadcast_to(jnp.sin(emb)[None], (batch, seq, dim))
    return cos, sin


# ----------------------------- linear kernel ---------------------------------
def _linear_kernel(x_ref, w_ref, o_ref):
    # x:(bt,In) bf16, w:(In,Out) bf16 (pre-transposed nn.Linear weight).
    o_ref[...] = jnp.dot(x_ref[...], w_ref[...],
                         preferred_element_type=jnp.float32).astype(o_ref.dtype)


def linear_pallas(x, w_t, *, block_rows=256):
    lead = x.shape[:-1]
    In = x.shape[-1]
    Out = w_t.shape[1]
    x2 = x.reshape(-1, In)
    T = x2.shape[0]
    bt = min(block_rows, T)
    out = pl.pallas_call(
        _linear_kernel,
        out_shape=jax.ShapeDtypeStruct((T, Out), x.dtype),
        grid_spec=pltpu.PrefetchScalarGridSpec(
            num_scalar_prefetch=0,
            grid=(pl.cdiv(T, bt),),
            in_specs=[pl.BlockSpec((bt, In), lambda i: (i, 0)),
                      pl.BlockSpec((In, Out), lambda i: (0, 0))],
            out_specs=pl.BlockSpec((bt, Out), lambda i: (i, 0)),
        ),
        compiler_params=pltpu.CompilerParams(dimension_semantics=("parallel",)),
    )(x2, w_t)
    return out.reshape(*lead, Out)


# --------------------- fused q_a -> RMSNorm -> q_b kernel --------------------
def _q_lora_kernel(x_ref, wa_ref, g_ref, wb_ref, o_ref, *, eps):
    t = jnp.dot(x_ref[...], wa_ref[...],
                preferred_element_type=jnp.float32).astype(o_ref.dtype)
    tf = t.astype(jnp.float32)                      # round to bf16 first (match ref)
    var = jnp.mean(tf * tf, axis=-1, keepdims=True)
    tn = (tf * lax.rsqrt(var + eps)).astype(o_ref.dtype) * g_ref[...]
    o_ref[...] = jnp.dot(tn, wb_ref[...],
                         preferred_element_type=jnp.float32).astype(o_ref.dtype)


def q_lora_proj_pallas(x2d, wa_t, gamma, wb_t, eps, *, block_rows=256):
    T, H = x2d.shape
    r = wa_t.shape[1]
    Out = wb_t.shape[1]
    bt = min(block_rows, T)
    g2 = gamma.reshape(1, r)
    return pl.pallas_call(
        functools.partial(_q_lora_kernel, eps=eps),
        out_shape=jax.ShapeDtypeStruct((T, Out), x2d.dtype),
        grid_spec=pltpu.PrefetchScalarGridSpec(
            num_scalar_prefetch=0,
            grid=(pl.cdiv(T, bt),),
            in_specs=[pl.BlockSpec((bt, H), lambda i: (i, 0)),
                      pl.BlockSpec((H, r), lambda i: (0, 0)),
                      pl.BlockSpec((1, r), lambda i: (0, 0)),
                      pl.BlockSpec((r, Out), lambda i: (0, 0))],
            out_specs=pl.BlockSpec((bt, Out), lambda i: (i, 0)),
        ),
        compiler_params=pltpu.CompilerParams(dimension_semantics=("parallel",)),
    )(x2d, wa_t, g2, wb_t)


# ------------- fused kv_a -> split -> RMSNorm -> kv_b kernel -----------------
def _kv_lora_kernel(x_ref, wc_ref, wpe_ref, g_ref, wb_ref, kv_ref, kpe_ref, *, eps):
    x = x_ref[...]
    kpe_ref[...] = jnp.dot(x, wpe_ref[...],
                           preferred_element_type=jnp.float32).astype(kpe_ref.dtype)
    c = jnp.dot(x, wc_ref[...],
                preferred_element_type=jnp.float32).astype(kv_ref.dtype)
    cf = c.astype(jnp.float32)
    var = jnp.mean(cf * cf, axis=-1, keepdims=True)
    cn = (cf * lax.rsqrt(var + eps)).astype(kv_ref.dtype) * g_ref[...]
    kv_ref[...] = jnp.dot(cn, wb_ref[...],
                          preferred_element_type=jnp.float32).astype(kv_ref.dtype)


def kv_lora_proj_pallas(x2d, wc_t, wpe_t, gamma, wb_t, eps, *, block_rows=256):
    T, H = x2d.shape
    r = wc_t.shape[1]
    dr = wpe_t.shape[1]
    Out = wb_t.shape[1]
    bt = min(block_rows, T)
    g2 = gamma.reshape(1, r)
    return pl.pallas_call(
        functools.partial(_kv_lora_kernel, eps=eps),
        out_shape=(jax.ShapeDtypeStruct((T, Out), x2d.dtype),
                   jax.ShapeDtypeStruct((T, dr), x2d.dtype)),
        grid_spec=pltpu.PrefetchScalarGridSpec(
            num_scalar_prefetch=0,
            grid=(pl.cdiv(T, bt),),
            in_specs=[pl.BlockSpec((bt, H), lambda i: (i, 0)),
                      pl.BlockSpec((H, r), lambda i: (0, 0)),
                      pl.BlockSpec((H, dr), lambda i: (0, 0)),
                      pl.BlockSpec((1, r), lambda i: (0, 0)),
                      pl.BlockSpec((r, Out), lambda i: (0, 0))],
            out_specs=[pl.BlockSpec((bt, Out), lambda i: (i, 0)),
                       pl.BlockSpec((bt, dr), lambda i: (i, 0))],
        ),
        compiler_params=pltpu.CompilerParams(dimension_semantics=("parallel",)),
    )(x2d, wc_t, wpe_t, g2, wb_t)


# ----------------------------- flash MLA kernel ------------------------------
def _mla_flash_kernel(qn_ref, qp_ref, kn_ref, kp_ref, v_ref, o_ref,
                      m_sc, l_sc, acc_sc, *, scale, num_heads):
    qi = pl.program_id(1)
    ki = pl.program_id(2)

    @pl.when(ki == 0)
    def _init():
        m_sc[...] = jnp.full(m_sc.shape, -jnp.inf, m_sc.dtype)
        l_sc[...] = jnp.zeros(l_sc.shape, l_sc.dtype)
        acc_sc[...] = jnp.zeros(acc_sc.shape, acc_sc.dtype)

    def process(masked):
        qn = qn_ref[...]                              # (NH, tq, dn) bf16
        qp = qp_ref[...]                              # (NH, tq, dr) bf16
        kn = kn_ref[...]                              # (NH, tk, dn) bf16
        kp = kp_ref[...]                              # (tk, dr)     bf16 (shared head)
        v = v_ref[...]                                # (NH, tk, dv) bf16
        kpb = jnp.broadcast_to(kp[None], (num_heads,) + kp.shape)

        # lane-dim contraction for both dots (no transposes)
        s = jnp.einsum("hqd,hkd->hqk", qn, kn,
                       preferred_element_type=jnp.float32)
        s = s + jnp.einsum("hqd,hkd->hqk", qp, kpb,
                           preferred_element_type=jnp.float32)
        s = s * scale

        if masked:
            # tq == tk and qi == ki on the diagonal block -> static row>=col mask.
            tq, tk = s.shape[-2], s.shape[-1]
            row = lax.broadcasted_iota(jnp.int32, (tq, tk), 0)
            col = lax.broadcasted_iota(jnp.int32, (tq, tk), 1)
            s = jnp.where(row >= col, s, -1e30)

        m_prev = m_sc[...]                            # (NH, tq, 1)
        m_new = jnp.maximum(m_prev, jnp.max(s, axis=-1, keepdims=True))
        alpha = jnp.exp(m_prev - m_new)
        p = jnp.exp(s - m_new)
        l_sc[...] = alpha * l_sc[...] + jnp.sum(p, axis=-1, keepdims=True)
        acc_sc[...] = alpha * acc_sc[...] + jnp.einsum(
            "hqk,hkd->hqd", p.astype(v.dtype), v,
            preferred_element_type=jnp.float32)
        m_sc[...] = m_new

    @pl.when(ki == qi)           # diagonal block: causal mask required
    def _diag():
        process(masked=True)

    @pl.when(ki < qi)            # strictly below diagonal: full block, no mask
    def _below():
        process(masked=False)

    # ki > qi: fully masked -> skipped (and its DMA is clamped away in index_map)

    @pl.when(ki == pl.num_programs(2) - 1)
    def _finalize():
        inv = pl.reciprocal(l_sc[...], approx=True)            # (NH, tq, 1)
        o = (acc_sc[...] * inv).astype(o_ref.dtype)            # (NH, tq, dv)
        # head-major lane concat -> (tq, NH*dv) lane-dense 256-wide store
        o_ref[...] = jnp.concatenate([o[h] for h in range(num_heads)], axis=-1)


def flash_mla_attention(q_nope, q_pe, k_nope, k_pe, v, scale, *, blk=256):
    """Causal flash MLA attention.

    q_nope,k_nope:(B,NH,S,dn)  q_pe:(B,NH,S,dr)  k_pe:(B,S,dr) shared head
    v:(B,NH,S,dv)  ->  (B,S,NH*dv) directly in output layout.
    """
    B, NH, S, dn = q_nope.shape
    dr = q_pe.shape[-1]
    dv = v.shape[-1]
    blk = min(blk, S)
    assert S % blk == 0, "seq len must be a multiple of the attention tile"
    nblk = S // blk

    kernel = functools.partial(_mla_flash_kernel, scale=scale, num_heads=NH)

    # Per-q-block index maps; kv block index clamped to the diagonal so
    # causally-skipped blocks never trigger a new DMA (revisit previous block).
    q_map = lambda b, qi, ki: (b, 0, qi, 0)
    kv_map = lambda b, qi, ki: (b, 0, jnp.minimum(ki, qi), 0)
    kp_map = lambda b, qi, ki: (b, jnp.minimum(ki, qi), 0)
    o_map = lambda b, qi, ki: (b, qi, 0)

    out = pl.pallas_call(
        kernel,
        out_shape=jax.ShapeDtypeStruct((B, S, NH * dv), v.dtype),
        grid_spec=pltpu.PrefetchScalarGridSpec(
            num_scalar_prefetch=0,
            grid=(B, nblk, nblk),
            in_specs=[
                pl.BlockSpec((None, NH, blk, dn), q_map),    # q_nope
                pl.BlockSpec((None, NH, blk, dr), q_map),    # q_pe
                pl.BlockSpec((None, NH, blk, dn), kv_map),   # k_nope
                pl.BlockSpec((None, blk, dr), kp_map),       # k_pe (shared head)
                pl.BlockSpec((None, NH, blk, dv), kv_map),   # v
            ],
            out_specs=pl.BlockSpec((None, blk, NH * dv), o_map),
            scratch_shapes=[pltpu.VMEM((NH, blk, 1), jnp.float32),
                            pltpu.VMEM((NH, blk, 1), jnp.float32),
                            pltpu.VMEM((NH, blk, dv), jnp.float32)],
        ),
        compiler_params=pltpu.CompilerParams(
            dimension_semantics=("parallel", "parallel", "arbitrary")),
    )(q_nope, q_pe, k_nope, k_pe, v)
    return out  # (B, S, NH*dv)


# ----------------------------- pallas forward --------------------------------
def deepseek_v3_flash_attention2_forward(hidden_states, params, position_embeddings, cfg):
    # TODO(synk): padding attention_mask, KV cache (past_key_value) and
    # attention dropout are not implemented (eval-mode causal forward only).
    B, S, H = hidden_states.shape
    NH = cfg.num_attention_heads
    dn, dr, dv = cfg.qk_nope_head_dim, cfg.qk_rope_head_dim, cfg.v_head_dim
    dq = dn + dr
    eps = cfg.rms_norm_eps
    x2d = hidden_states.reshape(-1, H)

    # q path: q_a_proj -> RMSNorm -> q_b_proj fused in one kernel
    if cfg.q_lora_rank is None:
        q = linear_pallas(x2d, params["q_proj_wT"])
    else:
        q = q_lora_proj_pallas(x2d, params["q_a_proj_wT"],
                               params["q_a_layernorm_w"],
                               params["q_b_proj_wT"], eps)
    q = q.reshape(B, S, NH, dq).transpose(0, 2, 1, 3)            # (B,NH,S,dq)
    q_nope, q_pe = q[..., :dn], q[..., dn:]

    # kv path: kv_a_proj -> split -> RMSNorm -> kv_b_proj fused (2 outputs)
    w_kva = params["kv_a_proj_wT"]
    kv, k_pe_flat = kv_lora_proj_pallas(
        x2d, w_kva[:, :cfg.kv_lora_rank], w_kva[:, cfg.kv_lora_rank:],
        params["kv_a_layernorm_w"], params["kv_b_proj_wT"], eps)
    kv = kv.reshape(B, S, NH, dn + dv).transpose(0, 2, 1, 3)     # (B,NH,S,dn+dv)
    k_nope, value_states = kv[..., :dn], kv[..., dn:]
    k_pe = k_pe_flat.reshape(B, S, 1, dr).transpose(0, 2, 1, 3)  # (B,1,S,dr)

    cos, sin = position_embeddings
    cos = cos.astype(value_states.dtype)
    sin = sin.astype(value_states.dtype)
    q_pe, k_pe = apply_rotary_pos_emb(q_pe, k_pe, cos, sin)

    # NOTE: the torch module zero-pads V to q_head_dim before flash attention
    # and slices back; computing at v_head_dim is numerically identical.
    scale = compute_softmax_scale(cfg)
    attn = flash_mla_attention(q_nope, q_pe, k_nope,
                               k_pe.reshape(B, S, dr), value_states, scale)
    out = linear_pallas(attn, params["o_proj_wT"])               # (B,S,H)
    return out


# ----------------------------- reference (plain JAX) -------------------------
def _ref_linear(x, w_t):
    return jnp.dot(x, w_t, preferred_element_type=jnp.float32).astype(x.dtype)


def _ref_rmsnorm(x, w, eps):
    xf = x.astype(jnp.float32)
    var = jnp.mean(xf * xf, axis=-1, keepdims=True)
    return (xf * lax.rsqrt(var + eps)).astype(x.dtype) * w


def reference_forward(hidden_states, params, position_embeddings, cfg):
    B, S, H = hidden_states.shape
    NH = cfg.num_attention_heads
    dn, dr, dv = cfg.qk_nope_head_dim, cfg.qk_rope_head_dim, cfg.v_head_dim
    dq = dn + dr
    eps = cfg.rms_norm_eps
    x2d = hidden_states.reshape(-1, H)

    if cfg.q_lora_rank is None:
        q = _ref_linear(x2d, params["q_proj_wT"])
    else:
        q = _ref_linear(x2d, params["q_a_proj_wT"])
        q = _ref_rmsnorm(q, params["q_a_layernorm_w"], eps)
        q = _ref_linear(q, params["q_b_proj_wT"])
    q = q.reshape(B, S, NH, dq).transpose(0, 2, 1, 3)
    q_nope, q_pe = q[..., :dn], q[..., dn:]

    ckv = _ref_linear(x2d, params["kv_a_proj_wT"])
    compressed_kv = ckv[:, : cfg.kv_lora_rank]
    k_pe = ckv[:, cfg.kv_lora_rank:].reshape(B, S, 1, dr).transpose(0, 2, 1, 3)
    compressed_kv = _ref_rmsnorm(compressed_kv, params["kv_a_layernorm_w"], eps)
    kv = _ref_linear(compressed_kv, params["kv_b_proj_wT"])
    kv = kv.reshape(B, S, NH, dn + dv).transpose(0, 2, 1, 3)
    k_nope, value_states = kv[..., :dn], kv[..., dn:]

    cos, sin = position_embeddings
    cos = cos.astype(value_states.dtype)
    sin = sin.astype(value_states.dtype)
    q_pe, k_pe = apply_rotary_pos_emb(q_pe, k_pe, cos, sin)

    query_states = jnp.concatenate([q_nope, q_pe], axis=-1)
    key_states = jnp.concatenate(
        [k_nope, jnp.broadcast_to(k_pe, (B, NH, S, dr))], axis=-1)

    scale = compute_softmax_scale(cfg)
    s = jnp.einsum("bhqd,bhkd->bhqk", query_states, key_states,
                   preferred_element_type=jnp.float32) * scale
    mask = jnp.arange(S)[:, None] >= jnp.arange(S)[None, :]
    s = jnp.where(mask, s, -jnp.inf)
    p = jax.nn.softmax(s, axis=-1).astype(value_states.dtype)
    attn = jnp.einsum("bhqk,bhkd->bhqd", p, value_states,
                      preferred_element_type=jnp.float32).astype(value_states.dtype)
    attn = attn.transpose(0, 2, 1, 3).reshape(B, S, NH * dv)
    out = _ref_linear(attn, params["o_proj_wT"])
    return out


# ----------------------------- main ------------------------------------------
if __name__ == "__main__":
    cfg = Cfg()
    B, S = 2, 512          # S=512 with blk=256 exercises multi-block causal flash
    H = cfg.hidden_size
    NH = cfg.num_attention_heads
    dn, dr, dv = cfg.qk_nope_head_dim, cfg.qk_rope_head_dim, cfg.v_head_dim
    dq = dn + dr
    dt = jnp.bfloat16

    key = jax.random.PRNGKey(0)
    ks = jax.random.split(key, 9)

    def linear_wT(k, out_f, in_f):
        # nn.Linear weight (out_f, in_f), pre-transposed ONCE here to (in_f, out_f)
        # so every kernel does a plain x @ W contraction.
        w = jax.random.normal(k, (out_f, in_f), jnp.float32) / math.sqrt(in_f)
        return w.T.astype(dt)

    params = {
        "q_a_proj_wT": linear_wT(ks[0], cfg.q_lora_rank, H),
        "q_a_layernorm_w": (1.0 + 0.1 * jax.random.normal(
            ks[1], (cfg.q_lora_rank,), jnp.float32)).astype(dt),
        "q_b_proj_wT": linear_wT(ks[2], NH * dq, cfg.q_lora_rank),
        "kv_a_proj_wT": linear_wT(ks[3], cfg.kv_lora_rank + dr, H),
        "kv_a_layernorm_w": (1.0 + 0.1 * jax.random.normal(
            ks[4], (cfg.kv_lora_rank,), jnp.float32)).astype(dt),
        "kv_b_proj_wT": linear_wT(ks[5], NH * (dn + dv), cfg.kv_lora_rank),
        "o_proj_wT": linear_wT(ks[6], H, NH * dv),
    }

    hidden_states = jax.random.normal(ks[7], (B, S, H), jnp.float32).astype(dt)
    cos, sin = make_rotary_embedding(B, S, dr, cfg.rope_theta)

    out = deepseek_v3_flash_attention2_forward(hidden_states, params, (cos, sin), cfg)
    out = jax.block_until_ready(out)

    ref = jax.block_until_ready(
        reference_forward(hidden_states, params, (cos, sin), cfg))

    np.testing.assert_allclose(
        np.asarray(out.astype(jnp.float32)),
        np.asarray(ref.astype(jnp.float32)),
        rtol=4e-2, atol=4e-2)
    print("KERNEL_OK")
</pallas_src>

<mosaic_0001>
module attributes {stable_mosaic.version = 11 : i64} {
  func.func @_q_lora_kernel(%arg0: i32, %arg1: memref<256x256xbf16, #tpu.memory_space<vmem>>, %arg2: memref<256x128xbf16, #tpu.memory_space<vmem>>, %arg3: memref<1x128xbf16, #tpu.memory_space<vmem>>, %arg4: memref<128x384xbf16, #tpu.memory_space<vmem>>, %arg5: memref<256x384xbf16, #tpu.memory_space<vmem>>) attributes {dimension_semantics = [#tpu.dimension_semantics<parallel>], iteration_bounds = array<i64: 4>, scalar_prefetch = 0 : i64, scratch_operands = 0 : i64, tpu.core_type = #tpu.core_type<tc>, window_params = [{transform_indices = @transform_0, window_bounds = array<i64: 256, 256>}, {pipeline_mode = #tpu.pipeline_mode<synchronous>, transform_indices = @transform_1, window_bounds = array<i64: 256, 128>}, {pipeline_mode = #tpu.pipeline_mode<synchronous>, transform_indices = @transform_2, window_bounds = array<i64: 1, 128>}, {pipeline_mode = #tpu.pipeline_mode<synchronous>, transform_indices = @transform_3, window_bounds = array<i64: 128, 384>}, {transform_indices = @transform_4, window_bounds = array<i64: 256, 384>}]} {
    %c0 = arith.constant 0 : index
    %c0_0 = arith.constant 0 : index
    %0 = vector.load %arg1[%c0, %c0_0] : memref<256x256xbf16, #tpu.memory_space<vmem>>, vector<256x256xbf16>
    %c0_1 = arith.constant 0 : index
    %c0_2 = arith.constant 0 : index
    %1 = vector.load %arg2[%c0_1, %c0_2] : memref<256x128xbf16, #tpu.memory_space<vmem>>, vector<256x128xbf16>
    %cst = arith.constant dense<0.000000e+00> : vector<256x128xf32>
    %2 = tpu.matmul %0, %1, %cst {dimension_numbers = #tpu.dot_dimension_numbers<[1], [0], [0], [1], [0, 0, 1, 1], [], []>} : vector<256x256xbf16>, vector<256x128xbf16>, vector<256x128xf32> -> vector<256x128xf32>
    %3 = arith.truncf %2 : vector<256x128xf32> to vector<256x128xbf16>
    %4 = arith.extf %3 : vector<256x128xbf16> to vector<256x128xf32>
    %5 = arith.mulf %4, %4 : vector<256x128xf32>
    %cst_3 = arith.constant dense<0.000000e+00> : vector<256xf32>
    %6 = vector.multi_reduction <add>, %5, %cst_3 [1] : vector<256x128xf32> to vector<256xf32>
    %7 = vector.shape_cast %6 : vector<256xf32> to vector<256x1xf32>
    %cst_4 = arith.constant 1.280000e+02 : f32
    %8 = vector.broadcast %cst_4 : f32 to vector<256x1xf32>
    %9 = arith.divf %7, %8 : vector<256x1xf32>
    %cst_5 = arith.constant 9.99999997E-7 : f32
    %10 = vector.broadcast %cst_5 : f32 to vector<256x1xf32>
    %11 = arith.addf %9, %10 : vector<256x1xf32>
    %12 = math.rsqrt %11 : vector<256x1xf32>
    %13 = vector.broadcast %12 : vector<256x1xf32> to vector<256x128xf32>
    %14 = arith.mulf %4, %13 : vector<256x128xf32>
    %15 = arith.truncf %14 : vector<256x128xf32> to vector<256x128xbf16>
    %c0_6 = arith.constant 0 : index
    %c0_7 = arith.constant 0 : index
    %16 = vector.load %arg3[%c0_6, %c0_7] : memref<1x128xbf16, #tpu.memory_space<vmem>>, vector<1x128xbf16>
    %17 = vector.broadcast %16 : vector<1x128xbf16> to vector<256x128xbf16>
    %18 = arith.mulf %15, %17 : vector<256x128xbf16>
    %c0_8 = arith.constant 0 : index
    %c0_9 = arith.constant 0 : index
    %19 = vector.load %arg4[%c0_8, %c0_9] : memref<128x384xbf16, #tpu.memory_space<vmem>>, vector<128x384xbf16>
    %cst_10 = arith.constant dense<0.000000e+00> : vector<256x384xf32>
    %20 = tpu.matmul %18, %19, %cst_10 {dimension_numbers = #tpu.dot_dimension_numbers<[1], [0], [0], [1], [0, 0, 1, 1], [], []>} : vector<256x128xbf16>, vector<128x384xbf16>, vector<256x384xf32> -> vector<256x384xf32>
    %21 = arith.truncf %20 : vector<256x384xf32> to vector<256x384xbf16>
    %c0_11 = arith.constant 0 : index
    %c0_12 = arith.constant 0 : index
    %22 = vector.load %arg5[%c0_11, %c0_12] : memref<256x384xbf16, #tpu.memory_space<vmem>>, vector<256x384xbf16>
    tpu.vector_store %arg5[%c0_11, %c0_12], %21 {strides = array<i32>} : memref<256x384xbf16, #tpu.memory_space<vmem>>, vector<256x384xbf16>,
    return
  }
  func.func @transform_0(%arg0: i32) -> (i32, i32) {
    %c0_i32 = arith.constant 0 : i32
    %c0_i32_0 = arith.constant 0 : i32
    return %arg0, %c0_i32 : i32, i32
  }
  func.func @transform_1(%arg0: i32) -> (i32, i32) {
    %c0_i32 = arith.constant 0 : i32
    %c0_i32_0 = arith.constant 0 : i32
    %c0_i32_1 = arith.constant 0 : i32
    return %c0_i32, %c0_i32_0 : i32, i32
  }
  func.func @transform_2(%arg0: i32) -> (i32, i32) {
    %c0_i32 = arith.constant 0 : i32
    %c0_i32_0 = arith.constant 0 : i32
    %c0_i32_1 = arith.constant 0 : i32
    return %c0_i32, %c0_i32_0 : i32, i32
  }
  func.func @transform_3(%arg0: i32) -> (i32, i32) {
    %c0_i32 = arith.constant 0 : i32
    %c0_i32_0 = arith.constant 0 : i32
    %c0_i32_1 = arith.constant 0 : i32
    return %c0_i32, %c0_i32_0 : i32, i32
  }
  func.func @transform_4(%arg0: i32) -> (i32, i32) {
    %c0_i32 = arith.constant 0 : i32
    %c0_i32_0 = arith.constant 0 : i32
    return %arg0, %c0_i32 : i32, i32
  }
}

</mosaic_0001>

<llo_original>
// kernel: tpu_custom_call.1
$region0: #{tpu_custom_call.1}
  #allocation0 [shape = 'u32[]', space=smem, size = 0x4, offset = 0x4, fixed_abs, tag = 'smem constant byte address 0x4 - core index']
  #allocation1 [shape = 'u32[144,128]{1,0:T(1,128)}', space=vmem, size = 0x12000, scoped, tag = 'internal scratch']
  %s0 = inlined_call_operand.hbm [shape: bf16[1024,256], index: 0, kind: input, shape index: {}]
  %s1 = inlined_call_operand.hbm [shape: bf16[256,128], index: 1, kind: input, shape index: {}]
  %s2 = inlined_call_operand.vmem [shape: bf16[1,128], index: 2, kind: input, shape index: {}]
  %s3 = inlined_call_operand.hbm [shape: bf16[128,384], index: 3, kind: input, shape index: {}]
  %s4 = inlined_call_operand.hbm [shape: bf16[1024,384], index: 4, kind: output, shape index: {}]
  %s5 = sld [smem:[#allocation0]]
  $region61: #{tpu_custom_call.1} parent=0
    _
  %s7 = ssub.s32 1, %s5
  %s8 = scalar_select 0, %s7, %s5
  $region1: #{tpu_custom_call.1} parent=0
    #allocation2 [shape = 'u8[262144]{0}', space=vmem, size = 0x40000, scoped, tag = 'input window, operand 0']
    #allocation3 [shape = 's32[2]{0}', space=sflag, size = 0x8, scoped, tag = 'scoped memory for tpu_custom_call.1']
    #allocation4 [shape = 's32[2]{0}', space=sflag, size = 0x8, scoped, tag = 'scoped memory for tpu_custom_call.1']
    #allocation5 [shape = 'u8[65536]{0}', space=vmem, size = 0x10000, scoped, tag = 'input window, operand 1, single buffered']
    #allocation6 [shape = 's32[1]{0}', space=sflag, size = 0x4, scoped, tag = 'scoped memory for tpu_custom_call.1']
    #allocation7 [shape = 'u8[98304]{0}', space=vmem, size = 0x18000, scoped, tag = 'input window, operand 3, single buffered']
    #allocation8 [shape = 'u8[393216]{0}', space=vmem, size = 0x60000, scoped, tag = 'output window, operand 0']
    %9 = vsyncpa [#allocation3], 0
    %s10 = scalar_lea.sflag [#allocation3], 1
    %11 = vsyncpa %s10, 0
    %12 = vsyncpa [#allocation6], 0
    %13 = vsyncpa [#allocation4], 0
    %s14 = scalar_lea.sflag [#allocation4], 1
    %15 = vsyncpa %s14, 0
    loop: start=0, step=1, limit=6
    $region2: #{tpu_custom_call.1} parent=1 // loop_pre_header
      _
    $region3: #{tpu_custom_call.1} parent=1 // loop_header
      %s17 = sphi 0, %s21
      %p18 = scmp.ge.s32.totalorder %s17, 6
      %s27 = sphi 0, %s29
      %s30 = sphi 0, %s27
      %s31 = sphi 0, %s30
      %s47 = sphi 0, %s31
      %s51 = sphi 0, %s51
      %s53 = sphi 0, %s51
      %s54 = sphi 0, %s53
      %s68 = sphi 0, %s54
      %s72 = sphi 0, %s72
      %s74 = sphi 0, %s72
      %s75 = sphi 0, %s74
      %s89 = sphi 0, %s75
      %s93 = sphi 0, %s93
      %s95 = sphi 0, %s93
      %s96 = sphi 0, %s95
      %s110 = sphi 0, %s96
      %s116 = sphi 0, %s118
      %s119 = sphi 0, %s116
      %s120 = sphi 0, %s119
      %s136 = sphi 0, %s120
    $region4: #{tpu_custom_call.1} parent=1 // loop_header_branch
      %20 = sbr.rel (%p18) target = $region8
    $region5: #{tpu_custom_call.1} parent=1 // loop_body
      %s22 = ssub.s32 %s17, 1
      %s23 = ssub.s32 %s17, 2
      %s24 = sadd.s32 %s17, 1
      %s25 = ssub.s32 %s17, %s24
      %p26 = scmp.eq.s32.totalorder %s25, 0
      %s28 = sadd.s32 %s27, 1
      %s29 = scalar_select %p26, %s27, %s28
      %p32 = pneg %p26
      %p33 = scmp.eq.s32.totalorder %s17, 3
      %p34 = por %p32, %p33
      %p35 = scmp.ne.s32.totalorder %s27, %s30
      %p36 = scmp.eq.s32.totalorder %s17, 0
      %p37 = por %p35, %p36
      %p38 = scmp.ne.s32.totalorder %s27, %s30
      %p39 = scmp.eq.s32.totalorder %s22, 3
      %p40 = por %p38, %p39
      %p41 = scmp.ne.s32.totalorder %s30, %s31
      %p42 = scmp.eq.s32.totalorder %s22, 0
      %p43 = por %p41, %p42
      %p44 = scmp.ne.s32.totalorder %s30, %s31
      %p45 = scmp.eq.s32.totalorder %s23, 3
      %p46 = por %p44, %p45
      %p48 = scmp.ne.s32.totalorder %s31, %s47
      %p49 = scmp.eq.s32.totalorder %s23, 0
      %p50 = por %p48, %p49
      %s52 = sadd.s32 %s51, 1
      %p55 = scmp.eq.s32.totalorder %s17, 3
      %p56 = scmp.ne.s32.totalorder %s51, %s53
      %p57 = scmp.eq.s32.totalorder %s17, 0
      %p58 = por %p56, %p57
      %p59 = scmp.ne.s32.totalorder %s51, %s53
      %p60 = scmp.eq.s32.totalorder %s22, 3
      %p61 = por %p59, %p60
      %p62 = scmp.ne.s32.totalorder %s53, %s54
      %p63 = scmp.eq.s32.totalorder %s22, 0
      %p64 = por %p62, %p63
      %p65 = scmp.ne.s32.totalorder %s53, %s54
      %p66 = scmp.eq.s32.totalorder %s23, 3
      %p67 = por %p65, %p66
      %p69 = scmp.ne.s32.totalorder %s54, %s68
      %p70 = scmp.eq.s32.totalorder %s23, 0
      %p71 = por %p69, %p70
      %s73 = sadd.s32 %s72, 1
      %p76 = scmp.eq.s32.totalorder %s17, 3
      %p77 = scmp.ne.s32.totalorder %s72, %s74
      %p78 = scmp.eq.s32.totalorder %s17, 0
      %p79 = por %p77, %p78
      %p80 = scmp.ne.s32.totalorder %s72, %s74
      %p81 = scmp.eq.s32.totalorder %s22, 3
      %p82 = por %p80, %p81
      %p83 = scmp.ne.s32.totalorder %s74, %s75
      %p84 = scmp.eq.s32.totalorder %s22, 0
      %p85 = por %p83, %p84
      %p86 = scmp.ne.s32.totalorder %s74, %s75
      %p87 = scmp.eq.s32.totalorder %s23, 3
      %p88 = por %p86, %p87
      %p90 = scmp.ne.s32.totalorder %s75, %s89
      %p91 = scmp.eq.s32.totalorder %s23, 0
      %p92 = por %p90, %p91
      %s94 = sadd.s32 %s93, 1
      %p97 = scmp.eq.s32.totalorder %s17, 3
      %p98 = scmp.ne.s32.totalorder %s93, %s95
      %p99 = scmp.eq.s32.totalorder %s17, 0
      %p100 = por %p98, %p99
      %p101 = scmp.ne.s32.totalorder %s93, %s95
      %p102 = scmp.eq.s32.totalorder %s22, 3
      %p103 = por %p101, %p102
      %p104 = scmp.ne.s32.totalorder %s95, %s96
      %p105 = scmp.eq.s32.totalorder %s22, 0
      %p106 = por %p104, %p105
      %p107 = scmp.ne.s32.totalorder %s95, %s96
      %p108 = scmp.eq.s32.totalorder %s23, 3
      %p109 = por %p107, %p108
      %p111 = scmp.ne.s32.totalorder %s96, %s110
      %p112 = scmp.eq.s32.totalorder %s23, 0
      %p113 = por %p111, %p112
      %s114 = ssub.s32 %s17, %s24
      %p115 = scmp.eq.s32.totalorder %s114, 0
      %s117 = sadd.s32 %s116, 1
      %s118 = scalar_select %p115, %s116, %s117
      %p121 = pneg %p115
      %p122 = scmp.eq.s32.totalorder %s17, 3
      %p123 = por %p121, %p122
      %p124 = scmp.ne.s32.totalorder %s116, %s119
      %p125 = scmp.eq.s32.totalorder %s17, 0
      %p126 = por %p124, %p125
      %p127 = scmp.ne.s32.totalorder %s116, %s119
      %p128 = scmp.eq.s32.totalorder %s22, 3
      %p129 = por %p127, %p128
      %p130 = scmp.ne.s32.totalorder %s119, %s120
      %p131 = scmp.eq.s32.totalorder %s22, 0
      %p132 = por %p130, %p131
      %p133 = scmp.ne.s32.totalorder %s119, %s120
      %p134 = scmp.eq.s32.totalorder %s23, 3
      %p135 = por %p133, %p134
      %p137 = scmp.ne.s32.totalorder %s120, %s136
      %p138 = scmp.eq.s32.totalorder %s23, 0
      %p139 = por %p137, %p138
      %p140 = scmp.le.s32.totalorder 1, %s17
      %p141 = scmp.lt.s32.totalorder %s17, 5
      %p142 = pnand %p140, %p141
      %p143 = pneg %p142
      // Predicated region
      $region9: #{tpu_custom_call.1} parent=5 // pred_check
        _
      $region10: #{tpu_custom_call.1} parent=5 // pred_check_branch
        %145 = sbr.rel (%p142) target = $region12
      $region11: #{tpu_custom_call.1} parent=5 // pred_region
        %s146 = ssub.s32 %s17, 1
        // Predicated region
        $region13: #{tpu_custom_call.1} parent=11 // pred_check
          %p147 = pneg %p64
        $region14: #{tpu_custom_call.1} parent=11 // pred_check_branch
          %149 = sbr.rel (%p147) target = $region16
        $region15: #{tpu_custom_call.1} parent=11 // pred_region
          %s151 = ssub.s32 2048, 2048
          %152 = vsyncadd [#allocation6], %s151
          %s153 = sshll.u32 [#allocation5], 4
          %s154 = int_to_ptr.vmem [resolvable:$true] %s153
          %159 = dma.hbm_to_vmem [thread:$0]  %s1, 2048, %s154, [#allocation6], 64, 64, 4
        $region16: #{tpu_custom_call.1} parent=11 // pred_fallthru
          _
        // Predicated region
        $region17: #{tpu_custom_call.1} parent=11 // pred_check
          %p160 = pneg %p85
        $region18: #{tpu_custom_call.1} parent=11 // pred_check_branch
          %162 = sbr.rel (%p160) target = $region20
        $region19: #{tpu_custom_call.1} parent=11 // pred_region
          _
        $region20: #{tpu_custom_call.1} parent=11 // pred_fallthru
          _
        // Predicated region
        $region21: #{tpu_custom_call.1} parent=11 // pred_check
          %p163 = pneg %p106
        $region22: #{tpu_custom_call.1} parent=11 // pred_check_branch
          %165 = sbr.rel (%p163) target = $region24
        $region23: #{tpu_custom_call.1} parent=11 // pred_region
          %s167 = ssub.s32 3072, 3072
          %168 = vsyncadd [#allocation6], %s167
          %s169 = sshll.u32 [#allocation7], 4
          %s170 = int_to_ptr.vmem [resolvable:$true] %s169
          %175 = dma.hbm_to_vmem [thread:$0]  %s3, 3072, %s170, [#allocation6], 192, 192, 12
        $region24: #{tpu_custom_call.1} parent=11 // pred_fallthru
          _
      $region12: #{tpu_custom_call.1} parent=5 // pred_fallthru
        _
      %p176 = scmp.lt.s32.totalorder %s17, 4
      // Predicated region
      $region25: #{tpu_custom_call.1} parent=5 // pred_check
        %p177 = pneg %p176
      $region26: #{tpu_custom_call.1} parent=5 // pred_check_branch
        %179 = sbr.rel (%p177) target = $region28
      $region27: #{tpu_custom_call.1} parent=5 // pred_region
        // Predicated region
        $region29: #{tpu_custom_call.1} parent=27 // pred_check
          %p180 = pneg %p37
        $region30: #{tpu_custom_call.1} parent=27 // pred_check_branch
          %182 = sbr.rel (%p180) target = $region32
        $region31: #{tpu_custom_call.1} parent=27 // pred_region
          %s183 = sand.u32 %s27, 1
          %s184 = scalar_lea.sflag [#allocation3], %s183
          %s185 = sand.u32 %s27, 1
          %s186 = smul.addr %s185, 256
          %s187 = scalar_lea.vmem [#allocation2], %s186
          %s188 = smul.u32 32, %s17
          %s190 = ssub.s32 4096, 4096
          %191 = vsyncadd %s184, %s190
          %s192 = smul.addr %s188, 2
          %s193 = smul.addr %s192, 64
          %s194 = scalar_lea.hbm %s0, %s193
          %s195 = sshll.u32 %s187, 4
          %s196 = int_to_ptr.vmem [resolvable:$true] %s195
          %201 = dma.hbm_to_vmem [thread:$0]  %s194, 4096, %s196, %s184, 128, 128, 8
        $region32: #{tpu_custom_call.1} parent=27 // pred_fallthru
          _
      $region28: #{tpu_custom_call.1} parent=5 // pred_fallthru
        _
      %p202 = scmp.le.s32.totalorder 1, %s17
      %p203 = scmp.lt.s32.totalorder %s17, 5
      %p204 = pnand %p202, %p203
      %p205 = pneg %p204
      // Predicated region
      $region33: #{tpu_custom_call.1} parent=5 // pred_check
        _
      $region34: #{tpu_custom_call.1} parent=5 // pred_check_branch
        %207 = sbr.rel (%p204) target = $region36
      $region35: #{tpu_custom_call.1} parent=5 // pred_region
        %s208 = ssub.s32 %s17, 1
        %s209 = sand.u32 %s30, 1
        %s210 = scalar_lea.sflag [#allocation3], %s209
        %s211 = sand.u32 %s30, 1
        %s212 = smul.addr %s211, 256
        %s213 = scalar_lea.vmem [#allocation2], %s212
        // Predicated region
        $region37: #{tpu_custom_call.1} parent=35 // pred_check
          %p214 = pneg %p43
        $region38: #{tpu_custom_call.1} parent=35 // pred_check_branch
          %216 = sbr.rel (%p214) target = $region40
        $region39: #{tpu_custom_call.1} parent=35 // pred_region
          %217 = dma.done %s210, 4096
        $region40: #{tpu_custom_call.1} parent=35 // pred_fallthru
          _
        // Predicated region
        $region41: #{tpu_custom_call.1} parent=35 // pred_check
          %p218 = pneg %p64
        $region42: #{tpu_custom_call.1} parent=35 // pred_check_branch
          %220 = sbr.rel (%p218) target = $region44
        $region43: #{tpu_custom_call.1} parent=35 // pred_region
          %221 = dma.done [#allocation6], 2048
        $region44: #{tpu_custom_call.1} parent=35 // pred_fallthru
          _
        // Predicated region
        $region45: #{tpu_custom_call.1} parent=35 // pred_check
          %p222 = pneg %p106
        $region46: #{tpu_custom_call.1} parent=35 // pred_check_branch
          %224 = sbr.rel (%p222) target = $region48
        $region47: #{tpu_custom_call.1} parent=35 // pred_region
          %225 = dma.done [#allocation6], 3072
        $region48: #{tpu_custom_call.1} parent=35 // pred_fallthru
          _
        %s226 = sand.u32 %s30, 1
        %s227 = scalar_lea.sflag [#allocation3], %s226
        %s228 = sand.u32 %s30, 1
        %s229 = smul.addr %s228, 256
        %s230 = scalar_lea.vmem [#allocation2], %s229
        %p231 = pneg %p43
        %p232 = pneg %p40
        %p233 = pneg %p64
        %p234 = pneg %p61
        %p235 = pneg %p85
        %p236 = pneg %p82
        %p237 = pneg %p106
        %p238 = pneg %p103
        %p239 = pneg %p132
        %p240 = pneg %p129
        %s241 = sand.u32 %s119, 1
        %s242 = scalar_lea.sflag [#allocation4], %s241
        %s243 = sand.u32 %s119, 1
        %s244 = smul.addr %s243, 384
        %s245 = scalar_lea.vmem [#allocation8], %s244
        %s246 = smul.u32 32, %s22
        %s247 = smul.u32 32, %s22
        %v249 = vld [vmem:[%s213] sm:$0xff]
        %v250 = vld [vmem:[%s213 + $0x8] sm:$0xff]
        %v251 = vld [vmem:[%s213 + $0x10] sm:$0xff]
        %v252 = vld [vmem:[%s213 + $0x18] sm:$0xff]
        %v253 = vld [vmem:[%s213 + $0x20] sm:$0xff]
        %v254 = vld [vmem:[%s213 + $0x28] sm:$0xff]
        %v255 = vld [vmem:[%s213 + $0x30] sm:$0xff]
        %v256 = vld [vmem:[%s213 + $0x38] sm:$0xff]
        %v257 = vld [vmem:[%s213 + $0x40] sm:$0xff]
        %v258 = vld [vmem:[%s213 + $0x48] sm:$0xff]
        %v259 = vld [vmem:[%s213 + $0x50] sm:$0xff]
        %v260 = vld [vmem:[%s213 + $0x58] sm:$0xff]
        %v261 = vld [vmem:[%s213 + $0x60] sm:$0xff]
        %v262 = vld [vmem:[%s213 + $0x68] sm:$0xff]
        %v263 = vld [vmem:[%s213 + $0x70] sm:$0xff]
        %v264 = vld [vmem:[%s213 + $0x78] sm:$0xff]
        %v265 = vld [vmem:[%s213 + $0x80] sm:$0xff]
        %v266 = vld [vmem:[%s213 + $0x88] sm:$0xff]
        %v267 = vld [vmem:[%s213 + $0x90] sm:$0xff]
        %v268 = vld [vmem:[%s213 + $0x98] sm:$0xff]
        %v269 = vld [vmem:[%s213 + $0xa0] sm:$0xff]
        %v270 = vld [vmem:[%s213 + $0xa8] sm:$0xff]
        %v271 = vld [vmem:[%s213 + $0xb0] sm:$0xff]
        %v272 = vld [vmem:[%s213 + $0xb8] sm:$0xff]
        %v273 = vld [vmem:[%s213 + $0xc0] sm:$0xff]
        %v274 = vld [vmem:[%s213 + $0xc8] sm:$0xff]
        %v275 = vld [vmem:[%s213 + $0xd0] sm:$0xff]
        %v276 = vld [vmem:[%s213 + $0xd8] sm:$0xff]
        %v277 = vld [vmem:[%s213 + $0xe0] sm:$0xff]
        %v278 = vld [vmem:[%s213 + $0xe8] sm:$0xff]
        %v279 = vld [vmem:[%s213 + $0xf0] sm:$0xff]
        %v280 = vld [vmem:[%s213 + $0xf8] sm:$0xff]
        %v281 = vld [vmem:[#allocation5] sm:$0xf]
        %v282 = vld [vmem:[#allocation5 + $0x4] sm:$0xf]
        %v283 = vld [vmem:[#allocation5 + $0x8] sm:$0xf]
        %v284 = vld [vmem:[#allocation5 + $0xc] sm:$0xf]
        %v285 = vld [vmem:[#allocation5 + $0x10] sm:$0xf]
        %v286 = vld [vmem:[#allocation5 + $0x14] sm:$0xf]
        %v287 = vld [vmem:[#allocation5 + $0x18] sm:$0xf]
        %v288 = vld [vmem:[#allocation5 + $0x1c] sm:$0xf]
        %v289 = vld [vmem:[#allocation5 + $0x20] sm:$0xf]
        %v290 = vld [vmem:[#allocation5 + $0x24] sm:$0xf]
        %v291 = vld [vmem:[#allocation5 + $0x28] sm:$0xf]
        %v292 = vld [vmem:[#allocation5 + $0x2c] sm:$0xf]
        %v293 = vld [vmem:[#allocation5 + $0x30] sm:$0xf]
        %v294 = vld [vmem:[#allocation5 + $0x34] sm:$0xf]
        %v295 = vld [vmem:[#allocation5 + $0x38] sm:$0xf]
        %v296 = vld [vmem:[#allocation5 + $0x3c] sm:$0xf]
        %v297 = vld [vmem:[#allocation5 + $0x40] sm:$0xf]
        %v298 = vld [vmem:[#allocation5 + $0x44] sm:$0xf]
        %v299 = vld [vmem:[#allocation5 + $0x48] sm:$0xf]
        %v300 = vld [vmem:[#allocation5 + $0x4c] sm:$0xf]
        %v301 = vld [vmem:[#allocation5 + $0x50] sm:$0xf]
        %v302 = vld [vmem:[#allocation5 + $0x54] sm:$0xf]
        %v303 = vld [vmem:[#allocation5 + $0x58] sm:$0xf]
        %v304 = vld [vmem:[#allocation5 + $0x5c] sm:$0xf]
        %v305 = vld [vmem:[#allocation5 + $0x60] sm:$0xf]
        %v306 = vld [vmem:[#allocation5 + $0x64] sm:$0xf]
        %v307 = vld [vmem:[#allocation5 + $0x68] sm:$0xf]
        %v308 = vld [vmem:[#allocation5 + $0x6c] sm:$0xf]
        %v309 = vld [vmem:[#allocation5 + $0x70] sm:$0xf]
        %v310 = vld [vmem:[#allocation5 + $0x74] sm:$0xf]
        %v311 = vld [vmem:[#allocation5 + $0x78] sm:$0xf]
        %v312 = vld [vmem:[#allocation5 + $0x7c] sm:$0xf]
        %v345 = vunpack.c.l.b16 %v249
        %v346 = vunpack.c.h.b16 %v249
        %v347 = vunpack.c.l.b16 %v250
        %v348 = vunpack.c.h.b16 %v250
        %v349 = vunpack.c.l.b16 %v251
        %v350 = vunpack.c.h.b16 %v251
        %v351 = vunpack.c.l.b16 %v252
        %v352 = vunpack.c.h.b16 %v252
        %v353 = vunpack.c.l.b16 %v253
        %v354 = vunpack.c.h.b16 %v253
        %v355 = vunpack.c.l.b16 %v254
        %v356 = vunpack.c.h.b16 %v254
        %v357 = vunpack.c.l.b16 %v255
        %v358 = vunpack.c.h.b16 %v255
        %v359 = vunpack.c.l.b16 %v256
        %v360 = vunpack.c.h.b16 %v256
        %v361 = vunpack.c.l.b16 %v257
        %v362 = vunpack.c.h.b16 %v257
        %v363 = vunpack.c.l.b16 %v258
        %v364 = vunpack.c.h.b16 %v258
        %v365 = vunpack.c.l.b16 %v259
        %v366 = vunpack.c.h.b16 %v259
        %v367 = vunpack.c.l.b16 %v260
        %v368 = vunpack.c.h.b16 %v260
        %v369 = vunpack.c.l.b16 %v261
        %v370 = vunpack.c.h.b16 %v261
        %v371 = vunpack.c.l.b16 %v262
        %v372 = vunpack.c.h.b16 %v262
        %v373 = vunpack.c.l.b16 %v263
        %v374 = vunpack.c.h.b16 %v263
        %v375 = vunpack.c.l.b16 %v264
        %v376 = vunpack.c.h.b16 %v264
        %v377 = vunpack.c.l.b16 %v265
        %v378 = vunpack.c.h.b16 %v265
        %v379 = vunpack.c.l.b16 %v266
        %v380 = vunpack.c.h.b16 %v266
        %v381 = vunpack.c.l.b16 %v267
        %v382 = vunpack.c.h.b16 %v267
        %v383 = vunpack.c.l.b16 %v268
        %v384 = vunpack.c.h.b16 %v268
        %v385 = vunpack.c.l.b16 %v269
        %v386 = vunpack.c.h.b16 %v269
        %v387 = vunpack.c.l.b16 %v270
        %v388 = vunpack.c.h.b16 %v270
        %v389 = vunpack.c.l.b16 %v271
        %v390 = vunpack.c.h.b16 %v271
        %v391 = vunpack.c.l.b16 %v272
        %v392 = vunpack.c.h.b16 %v272
        %v393 = vunpack.c.l.b16 %v273
        %v394 = vunpack.c.h.b16 %v273
        %v395 = vunpack.c.l.b16 %v274
        %v396 = vunpack.c.h.b16 %v274
        %v397 = vunpack.c.l.b16 %v275
        %v398 = vunpack.c.h.b16 %v275
        %v399 = vunpack.c.l.b16 %v276
        %v400 = vunpack.c.h.b16 %v276
        %v401 = vunpack.c.l.b16 %v277
        %v402 = vunpack.c.h.b16 %v277
        %v403 = vunpack.c.l.b16 %v278
        %v404 = vunpack.c.h.b16 %v278
        %v405 = vunpack.c.l.b16 %v279
        %v406 = vunpack.c.h.b16 %v279
        %v407 = vunpack.c.l.b16 %v280
        %v408 = vunpack.c.h.b16 %v280
        %v409 = vpack.c.b16 %v347, %v345
        %v410 = vpack.c.b16 %v348, %v346
        %v411 = vpack.c.b16 %v351, %v349
        %v412 = vpack.c.b16 %v352, %v350
        %v413 = vpack.c.b16 %v355, %v353
        %v414 = vpack.c.b16 %v356, %v354
        %v415 = vpack.c.b16 %v359, %v357
        %v416 = vpack.c.b16 %v360, %v358
        %v417 = vpack.c.b16 %v363, %v361
        %v418 = vpack.c.b16 %v364, %v362
        %v419 = vpack.c.b16 %v367, %v365
        %v420 = vpack.c.b16 %v368, %v366
        %v421 = vpack.c.b16 %v371, %v369
        %v422 = vpack.c.b16 %v372, %v370
        %v423 = vpack.c.b16 %v375, %v373
        %v424 = vpack.c.b16 %v376, %v374
        %v425 = vpack.c.b16 %v379, %v377
        %v426 = vpack.c.b16 %v380, %v378
        %v427 = vpack.c.b16 %v383, %v381
        %v428 = vpack.c.b16 %v384, %v382
        %v429 = vpack.c.b16 %v387, %v385
        %v430 = vpack.c.b16 %v388, %v386
        %v431 = vpack.c.b16 %v391, %v389
        %v432 = vpack.c.b16 %v392, %v390
        %v433 = vpack.c.b16 %v395, %v393
        %v434 = vpack.c.b16 %v396, %v394
        %v435 = vpack.c.b16 %v399, %v397
        %v436 = vpack.c.b16 %v400, %v398
        %v437 = vpack.c.b16 %v403, %v401
        %v438 = vpack.c.b16 %v404, %v402
        %v439 = vpack.c.b16 %v407, %v405
        %v440 = vpack.c.b16 %v408, %v406
        %v505 = vunpack.c.l.b16 %v281
        %v506 = vunpack.c.l.b16 %v282
        %v507 = vunpack.c.l.b16 %v283
        %v508 = vunpack.c.l.b16 %v284
        %v509 = vunpack.c.l.b16 %v285
        %v510 = vunpack.c.l.b16 %v286
        %v511 = vunpack.c.l.b16 %v287
        %v512 = vunpack.c.l.b16 %v288
        %v513 = vunpack.c.l.b16 %v289
        %v514 = vunpack.c.l.b16 %v290
        %v515 = vunpack.c.l.b16 %v291
        %v516 = vunpack.c.l.b16 %v292
        %v517 = vunpack.c.l.b16 %v293
        %v518 = vunpack.c.l.b16 %v294
        %v519 = vunpack.c.l.b16 %v295
        %v520 = vunpack.c.l.b16 %v296
        %v521 = vunpack.c.l.b16 %v297
        %v522 = vunpack.c.l.b16 %v298
        %v523 = vunpack.c.l.b16 %v299
        %v524 = vunpack.c.l.b16 %v300
        %v525 = vunpack.c.l.b16 %v301
        %v526 = vunpack.c.l.b16 %v302
        %v527 = vunpack.c.l.b16 %v303
        %v528 = vunpack.c.l.b16 %v304
        %v529 = vunpack.c.l.b16 %v305
        %v530 = vunpack.c.l.b16 %v306
        %v531 = vunpack.c.l.b16 %v307
        %v532 = vunpack.c.l.b16 %v308
        %v533 = vunpack.c.l.b16 %v309
        %v534 = vunpack.c.l.b16 %v310
        %v535 = vunpack.c.l.b16 %v311
        %v536 = vunpack.c.l.b16 %v312
        %v537 = vpack.c.b16 %v506, %v505
        %v538 = vpack.c.b16 %v508, %v507
        %v539 = vpack.c.b16 %v510, %v509
        %v540 = vpack.c.b16 %v512, %v511
        %v541 = vpack.c.b16 %v514, %v513
        %v542 = vpack.c.b16 %v516, %v515
        %v543 = vpack.c.b16 %v518, %v517
        %v544 = vpack.c.b16 %v520, %v519
        %v545 = vpack.c.b16 %v522, %v521
        %v546 = vpack.c.b16 %v524, %v523
        %v547 = vpack.c.b16 %v526, %v525
        %v548 = vpack.c.b16 %v528, %v527
        %v549 = vpack.c.b16 %v530, %v529
        %v550 = vpack.c.b16 %v532, %v531
        %v551 = vpack.c.b16 %v534, %v533
        %v552 = vpack.c.b16 %v536, %v535
        %569 = vmatprep.subr.bf16.mxu0 0
        %570 = vmatpush1.bf16.msra.mxu0 %v537
        %571 = vmatprep.subr.bf16.mxu0 0
        %572 = vmatpush1.bf16.msra.mxu0 %v538
        %573 = vmatprep.subr.bf16.mxu0 0
        %574 = vmatpush1.bf16.msra.mxu0 %v539
        %575 = vmatprep.subr.bf16.mxu0 0
        %576 = vmatpush1.bf16.msra.mxu0 %v540
        %577 = vmatprep.subr.bf16.mxu0 0
        %578 = vmatpush1.bf16.msra.mxu0 %v541
        %579 = vmatprep.subr.bf16.mxu0 0
        %580 = vmatpush1.bf16.msra.mxu0 %v542
        %581 = vmatprep.subr.bf16.mxu0 0
        %582 = vmatpush1.bf16.msra.mxu0 %v543
        %583 = vmatprep.subr.bf16.mxu0 0
        %584 = vmatpush1.bf16.msra.mxu0 %v544
        %585 = vmatprep.subr.bf16.mxu0 0
        %586 = vmatpush1.bf16.msra.mxu0 %v545
        %587 = vmatprep.subr.bf16.mxu0 0
        %588 = vmatpush1.bf16.msra.mxu0 %v546
        %589 = vmatprep.subr.bf16.mxu0 0
        %590 = vmatpush1.bf16.msra.mxu0 %v547
        %591 = vmatprep.subr.bf16.mxu0 0
        %592 = vmatpush1.bf16.msra.mxu0 %v548
        %593 = vmatprep.subr.bf16.mxu0 0
        %594 = vmatpush1.bf16.msra.mxu0 %v549
        %595 = vmatprep.subr.bf16.mxu0 0
        %596 = vmatpush1.bf16.msra.mxu0 %v550
        %597 = vmatprep.subr.bf16.mxu0 0
        %598 = vmatpush1.bf16.msra.mxu0 %v551
        %599 = vmatprep.subr.bf16.mxu0 0
        %600 = vmatpush1.bf16.msra.mxu0 %v552
        %601 = vmatprep.mubr.bf16.mxu0 %v410
        %602 = vmatmul.mubr.bf16.gmra.mrb[0].mxu0 %v409
        %v603 = vpop.f32.mrb[0].mxu0
        %v604 = vadd.f32 0.0, %v603
        %v605 = vpop.f32.mrb[0].mxu0
        %v606 = vpop.f32.mrb[0].mxu0
        %v607 = vadd.f32 0.0, %v606
        %v608 = vpop.f32.mrb[0].mxu0
        %609 = vmatprep.mubr.bf16.mxu0 %v412
        %610 = vmatmul.mubr.bf16.gmra.mrb[0].mxu0 %v411
        %v611 = vpop.f32.mrb[0].mxu0
        %v612 = vadd.f32 0.0, %v611
        %v613 = vpop.f32.mrb[0].mxu0
        %v614 = vpop.f32.mrb[0].mxu0
        %v615 = vadd.f32 0.0, %v614
        %v616 = vpop.f32.mrb[0].mxu0
        %617 = vmatprep.mubr.bf16.mxu0 %v414
        %618 = vmatmul.mubr.bf16.gmra.mrb[0].mxu0 %v413
        %v619 = vpop.f32.mrb[0].mxu0
        %v620 = vadd.f32 0.0, %v619
        %v621 = vpop.f32.mrb[0].mxu0
        %v622 = vpop.f32.mrb[0].mxu0
        %v623 = vadd.f32 0.0, %v622
        %v624 = vpop.f32.mrb[0].mxu0
        %625 = vmatprep.mubr.bf16.mxu0 %v416
        %626 = vmatmul.mubr.bf16.gmra.mrb[0].mxu0 %v415
        %v627 = vpop.f32.mrb[0].mxu0
        %v628 = vadd.f32 0.0, %v627
        %v629 = vpop.f32.mrb[0].mxu0
        %v630 = vpop.f32.mrb[0].mxu0
        %v631 = vadd.f32 0.0, %v630
        %v632 = vpop.f32.mrb[0].mxu0
        %633 = vmatprep.mubr.bf16.mxu0 %v418
        %634 = vmatmul.mubr.bf16.gmra.mrb[0].mxu0 %v417
        %v635 = vpop.f32.mrb[0].mxu0
        %v636 = vadd.f32 0.0, %v635
        %v637 = vpop.f32.mrb[0].mxu0
        %v638 = vpop.f32.mrb[0].mxu0
        %v639 = vadd.f32 0.0, %v638
        %v640 = vpop.f32.mrb[0].mxu0
        %641 = vmatprep.mubr.bf16.mxu0 %v420
        %642 = vmatmul.mubr.bf16.gmra.mrb[0].mxu0 %v419
        %v643 = vpop.f32.mrb[0].mxu0
        %v644 = vadd.f32 0.0, %v643
        %v645 = vpop.f32.mrb[0].mxu0
        %v646 = vpop.f32.mrb[0].mxu0
        %v647 = vadd.f32 0.0, %v646
        %v648 = vpop.f32.mrb[0].mxu0
        %649 = vmatprep.mubr.bf16.mxu0 %v422
        %650 = vmatmul.mubr.bf16.gmra.mrb[0].mxu0 %v421
        %v651 = vpop.f32.mrb[0].mxu0
        %v652 = vadd.f32 0.0, %v651
        %v653 = vpop.f32.mrb[0].mxu0
        %v654 = vpop.f32.mrb[0].mxu0
        %v655 = vadd.f32 0.0, %v654
        %v656 = vpop.f32.mrb[0].mxu0
        %657 = vmatprep.mubr.bf16.mxu0 %v424
        %658 = vmatmul.mubr.bf16.gmra.mrb[0].mxu0 %v423
        %v659 = vpop.f32.mrb[0].mxu0
        %v660 = vadd.f32 0.0, %v659
        %v661 = vpop.f32.mrb[0].mxu0
        %v662 = vpop.f32.mrb[0].mxu0
        %v663 = vadd.f32 0.0, %v662
        %v664 = vpop.f32.mrb[0].mxu0
        %665 = vmatprep.mubr.bf16.mxu0 %v426
        %666 = vmatmul.mubr.bf16.gmra.mrb[0].mxu0 %v425
        %v667 = vpop.f32.mrb[0].mxu0
        %v668 = vadd.f32 0.0, %v667
        %v669 = vpop.f32.mrb[0].mxu0
        %v670 = vpop.f32.mrb[0].mxu0
        %v671 = vadd.f32 0.0, %v670
        %v672 = vpop.f32.mrb[0].mxu0
        %673 = vmatprep.mubr.bf16.mxu0 %v428
        %674 = vmatmul.mubr.bf16.gmra.mrb[0].mxu0 %v427
        %v675 = vpop.f32.mrb[0].mxu0
        %v676 = vadd.f32 0.0, %v675
        %v677 = vpop.f32.mrb[0].mxu0
        %v678 = vpop.f32.mrb[0].mxu0
        %v679 = vadd.f32 0.0, %v678
        %v680 = vpop.f32.mrb[0].mxu0
        %681 = vmatprep.mubr.bf16.mxu0 %v430
        %682 = vmatmul.mubr.bf16.gmra.mrb[0].mxu0 %v429
        %v683 = vpop.f32.mrb[0].mxu0
        %v684 = vadd.f32 0.0, %v683
        %v685 = vpop.f32.mrb[0].mxu0
        %v686 = vpop.f32.mrb[0].mxu0
        %v687 = vadd.f32 0.0, %v686
        %v688 = vpop.f32.mrb[0].mxu0
        %689 = vmatprep.mubr.bf16.mxu0 %v432
        %690 = vmatmul.mubr.bf16.gmra.mrb[0].mxu0 %v431
        %v691 = vpop.f32.mrb[0].mxu0
        %v692 = vadd.f32 0.0, %v691
        %v693 = vpop.f32.mrb[0].mxu0
        %v694 = vpop.f32.mrb[0].mxu0
        %v695 = vadd.f32 0.0, %v694
        %v696 = vpop.f32.mrb[0].mxu0
        %697 = vmatprep.mubr.bf16.mxu0 %v434
        %698 = vmatmul.mubr.bf16.gmra.mrb[0].mxu0 %v433
        %v699 = vpop.f32.mrb[0].mxu0
        %v700 = vadd.f32 0.0, %v699
        %v701 = vpop.f32.mrb[0].mxu0
        %v702 = vpop.f32.mrb[0].mxu0
        %v703 = vadd.f32 0.0, %v702
        %v704 = vpop.f32.mrb[0].mxu0
        %705 = vmatprep.mubr.bf16.mxu0 %v436
        %706 = vmatmul.mubr.bf16.gmra.mrb[0].mxu0 %v435
        %v707 = vpop.f32.mrb[0].mxu0
        %v708 = vadd.f32 0.0, %v707
        %v709 = vpop.f32.mrb[0].mxu0
        %v710 = vpop.f32.mrb[0].mxu0
        %v711 = vadd.f32 0.0, %v710
        %v712 = vpop.f32.mrb[0].mxu0
        %713 = vmatprep.mubr.bf16.mxu0 %v438
        %714 = vmatmul.mubr.bf16.gmra.mrb[0].mxu0 %v437
        %v715 = vpop.f32.mrb[0].mxu0
        %v716 = vadd.f32 0.0, %v715
        %v717 = vpop.f32.mrb[0].mxu0
        %v718 = vpop.f32.mrb[0].mxu0
        %v719 = vadd.f32 0.0, %v718
        %v720 = vpop.f32.mrb[0].mxu0
        %721 = vmatprep.mubr.bf16.mxu0 %v440
        %722 = vmatmul.mubr.bf16.gmra.mrb[0].mxu0 %v439
        %v723 = vpop.f32.mrb[0].mxu0
        %v724 = vadd.f32 0.0, %v723
        %v725 = vpop.f32.mrb[0].mxu0
        %v726 = vpop.f32.mrb[0].mxu0
        %v727 = vadd.f32 0.0, %v726
        %v728 = vpop.f32.mrb[0].mxu0
        %729 = vdwg.mxu0
        %v730 = vpack.c.bf16 %v607, %v604
        %v731 = vpack.c.bf16 %v615, %v612
        %v732 = vpack.c.bf16 %v623, %v620
        %v733 = vpack.c.bf16 %v631, %v628
        %v734 = vpack.c.bf16 %v639, %v636
        %v735 = vpack.c.bf16 %v647, %v644
        %v736 = vpack.c.bf16 %v655, %v652
        %v737 = vpack.c.bf16 %v663, %v660
        %v738 = vpack.c.bf16 %v671, %v668
        %v739 = vpack.c.bf16 %v679, %v676
        %v740 = vpack.c.bf16 %v687, %v684
        %v741 = vpack.c.bf16 %v695, %v692
        %v742 = vpack.c.bf16 %v703, %v700
        %v743 = vpack.c.bf16 %v711, %v708
        %v744 = vpack.c.bf16 %v719, %v716
        %v745 = vpack.c.bf16 %v727, %v724
        %v746 = vunpack.c.l.bf16 %v730
        %v747 = vunpack.c.h.bf16 %v730
        %v748 = vunpack.c.l.bf16 %v731
        %v749 = vunpack.c.h.bf16 %v731
        %v750 = vunpack.c.l.bf16 %v732
        %v751 = vunpack.c.h.bf16 %v732
        %v752 = vunpack.c.l.bf16 %v733
        %v753 = vunpack.c.h.bf16 %v733
        %v754 = vunpack.c.l.bf16 %v734
        %v755 = vunpack.c.h.bf16 %v734
        %v756 = vunpack.c.l.bf16 %v735
        %v757 = vunpack.c.h.bf16 %v735
        %v758 = vunpack.c.l.bf16 %v736
        %v759 = vunpack.c.h.bf16 %v736
        %v760 = vunpack.c.l.bf16 %v737
        %v761 = vunpack.c.h.bf16 %v737
        %v762 = vunpack.c.l.bf16 %v738
        %v763 = vunpack.c.h.bf16 %v738
        %v764 = vunpack.c.l.bf16 %v739
        %v765 = vunpack.c.h.bf16 %v739
        %v766 = vunpack.c.l.bf16 %v740
        %v767 = vunpack.c.h.bf16 %v740
        %v768 = vunpack.c.l.bf16 %v741
        %v769 = vunpack.c.h.bf16 %v741
        %v770 = vunpack.c.l.bf16 %v742
        %v771 = vunpack.c.h.bf16 %v742
        %v772 = vunpack.c.l.bf16 %v743
        %v773 = vunpack.c.h.bf16 %v743
        %v774 = vunpack.c.l.bf16 %v744
        %v775 = vunpack.c.h.bf16 %v744
        %v776 = vunpack.c.l.bf16 %v745
        %v777 = vunpack.c.h.bf16 %v745
        %v778 = vmul.f32 %v746, %v746
        %v779 = vmul.f32 %v747, %v747
        %v780 = vmul.f32 %v748, %v748
        %v781 = vmul.f32 %v749, %v749
        %v782 = vmul.f32 %v750, %v750
        %v783 = vmul.f32 %v751, %v751
        %v784 = vmul.f32 %v752, %v752
        %v785 = vmul.f32 %v753, %v753
        %v786 = vmul.f32 %v754, %v754
        %v787 = vmul.f32 %v755, %v755
        %v788 = vmul.f32 %v756, %v756
        %v789 = vmul.f32 %v757, %v757
        %v790 = vmul.f32 %v758, %v758
        %v791 = vmul.f32 %v759, %v759
        %v792 = vmul.f32 %v760, %v760
        %v793 = vmul.f32 %v761, %v761
        %v794 = vmul.f32 %v762, %v762
        %v795 = vmul.f32 %v763, %v763
        %v796 = vmul.f32 %v764, %v764
        %v797 = vmul.f32 %v765, %v765
        %v798 = vmul.f32 %v766, %v766
        %v799 = vmul.f32 %v767, %v767
        %v800 = vmul.f32 %v768, %v768
        %v801 = vmul.f32 %v769, %v769
        %v802 = vmul.f32 %v770, %v770
        %v803 = vmul.f32 %v771, %v771
        %v804 = vmul.f32 %v772, %v772
        %v805 = vmul.f32 %v773, %v773
        %v806 = vmul.f32 %v774, %v774
        %v807 = vmul.f32 %v775, %v775
        %v808 = vmul.f32 %v776, %v776
        %v809 = vmul.f32 %v777, %v777
        %810 = vadd.xlane.f32.xlu0 %v778
        %v811 = vpop.xlane.xlu0 %810
        %812 = vadd.xlane.f32.xlu0 %v779
        %v813 = vpop.xlane.xlu0 %812
        %814 = vadd.xlane.f32.xlu0 %v780
        %v815 = vpop.xlane.xlu0 %814
        %816 = vadd.xlane.f32.xlu0 %v781
        %v817 = vpop.xlane.xlu0 %816
        %818 = vadd.xlane.f32.xlu0 %v782
        %v819 = vpop.xlane.xlu0 %818
        %820 = vadd.xlane.f32.xlu0 %v783
        %v821 = vpop.xlane.xlu0 %820
        %822 = vadd.xlane.f32.xlu0 %v784
        %v823 = vpop.xlane.xlu0 %822
        %824 = vadd.xlane.f32.xlu0 %v785
        %v825 = vpop.xlane.xlu0 %824
        %826 = vadd.xlane.f32.xlu0 %v786
        %v827 = vpop.xlane.xlu0 %826
        %828 = vadd.xlane.f32.xlu0 %v787
        %v829 = vpop.xlane.xlu0 %828
        %830 = vadd.xlane.f32.xlu0 %v788
        %v831 = vpop.xlane.xlu0 %830
        %832 = vadd.xlane.f32.xlu0 %v789
        %v833 = vpop.xlane.xlu0 %832
        %834 = vadd.xlane.f32.xlu0 %v790
        %v835 = vpop.xlane.xlu0 %834
        %836 = vadd.xlane.f32.xlu0 %v791
        %v837 = vpop.xlane.xlu0 %836
        %838 = vadd.xlane.f32.xlu0 %v792
        %v839 = vpop.xlane.xlu0 %838
        %840 = vadd.xlane.f32.xlu0 %v793
        %v841 = vpop.xlane.xlu0 %840
        %842 = vadd.xlane.f32.xlu0 %v794
        %v843 = vpop.xlane.xlu0 %842
        %844 = vadd.xlane.f32.xlu0 %v795
        %v845 = vpop.xlane.xlu0 %844
        %846 = vadd.xlane.f32.xlu0 %v796
        %v847 = vpop.xlane.xlu0 %846
        %848 = vadd.xlane.f32.xlu0 %v797
        %v849 = vpop.xlane.xlu0 %848
        %850 = vadd.xlane.f32.xlu0 %v798
        %v851 = vpop.xlane.xlu0 %850
        %852 = vadd.xlane.f32.xlu0 %v799
        %v853 = vpop.xlane.xlu0 %852
        %854 = vadd.xlane.f32.xlu0 %v800
        %v855 = vpop.xlane.xlu0 %854
        %856 = vadd.xlane.f32.xlu0 %v801
        %v857 = vpop.xlane.xlu0 %856
        %858 = vadd.xlane.f32.xlu0 %v802
        %v859 = vpop.xlane.xlu0 %858
        %860 = vadd.xlane.f32.xlu0 %v803
        %v861 = vpop.xlane.xlu0 %860
        %862 = vadd.xlane.f32.xlu0 %v804
        %v863 = vpop.xlane.xlu0 %862
        %864 = vadd.xlane.f32.xlu0 %v805
        %v865 = vpop.xlane.xlu0 %864
        %866 = vadd.xlane.f32.xlu0 %v806
        %v867 = vpop.xlane.xlu0 %866
        %868 = vadd.xlane.f32.xlu0 %v807
        %v869 = vpop.xlane.xlu0 %868
        %870 = vadd.xlane.f32.xlu0 %v808
        %v871 = vpop.xlane.xlu0 %870
        %872 = vadd.xlane.f32.xlu0 %v809
        %v873 = vpop.xlane.xlu0 %872
        %v874 = vrcp.pop 128.0
        %v875 = vmul.f32 %v811, %v874
        %v876 = vmul.f32 %v813, %v874
        %v877 = vmul.f32 %v815, %v874
        %v878 = vmul.f32 %v817, %v874
        %v879 = vmul.f32 %v819, %v874
        %v880 = vmul.f32 %v821, %v874
        %v881 = vmul.f32 %v823, %v874
        %v882 = vmul.f32 %v825, %v874
        %v883 = vmul.f32 %v827, %v874
        %v884 = vmul.f32 %v829, %v874
        %v885 = vmul.f32 %v831, %v874
        %v886 = vmul.f32 %v833, %v874
        %v887 = vmul.f32 %v835, %v874
        %v888 = vmul.f32 %v837, %v874
        %v889 = vmul.f32 %v839, %v874
        %v890 = vmul.f32 %v841, %v874
        %v891 = vmul.f32 %v843, %v874
        %v892 = vmul.f32 %v845, %v874
        %v893 = vmul.f32 %v847, %v874
        %v894 = vmul.f32 %v849, %v874
        %v895 = vmul.f32 %v851, %v874
        %v896 = vmul.f32 %v853, %v874
        %v897 = vmul.f32 %v855, %v874
        %v898 = vmul.f32 %v857, %v874
        %v899 = vmul.f32 %v859, %v874
        %v900 = vmul.f32 %v861, %v874
        %v901 = vmul.f32 %v863, %v874
        %v902 = vmul.f32 %v865, %v874
        %v903 = vmul.f32 %v867, %v874
        %v904 = vmul.f32 %v869, %v874
        %v905 = vmul.f32 %v871, %v874
        %v906 = vmul.f32 %v873, %v874
        %v907 = vadd.f32 %v875, 1e-06
        %v908 = vadd.f32 %v876, 1e-06
        %v909 = vadd.f32 %v877, 1e-06
        %v910 = vadd.f32 %v878, 1e-06
        %v911 = vadd.f32 %v879, 1e-06
        %v912 = vadd.f32 %v880, 1e-06
        %v913 = vadd.f32 %v881, 1e-06
        %v914 = vadd.f32 %v882, 1e-06
        %v915 = vadd.f32 %v883, 1e-06
        %v916 = vadd.f32 %v884, 1e-06
        %v917 = vadd.f32 %v885, 1e-06
        %v918 = vadd.f32 %v886, 1e-06
        %v919 = vadd.f32 %v887, 1e-06
        %v920 = vadd.f32 %v888, 1e-06
        %v921 = vadd.f32 %v889, 1e-06
        %v922 = vadd.f32 %v890, 1e-06
        %v923 = vadd.f32 %v891, 1e-06
        %v924 = vadd.f32 %v892, 1e-06
        %v925 = vadd.f32 %v893, 1e-06
        %v926 = vadd.f32 %v894, 1e-06
        %v927 = vadd.f32 %v895, 1e-06
        %v928 = vadd.f32 %v896, 1e-06
        %v929 = vadd.f32 %v897, 1e-06
        %v930 = vadd.f32 %v898, 1e-06
        %v931 = vadd.f32 %v899, 1e-06
        %v932 = vadd.f32 %v900, 1e-06
        %v933 = vadd.f32 %v901, 1e-06
        %v934 = vadd.f32 %v902, 1e-06
        %v935 = vadd.f32 %v903, 1e-06
        %v936 = vadd.f32 %v904, 1e-06
        %v937 = vadd.f32 %v905, 1e-06
        %v938 = vadd.f32 %v906, 1e-06
        %v939 = vrsqrt.pop %v907
        %v940 = vrsqrt.pop %v908
        %v941 = vrsqrt.pop %v909
        %v942 = vrsqrt.pop %v910
        %v943 = vrsqrt.pop %v911
        %v944 = vrsqrt.pop %v912
        %v945 = vrsqrt.pop %v913
        %v946 = vrsqrt.pop %v914
        %v947 = vrsqrt.pop %v915
        %v948 = vrsqrt.pop %v916
        %v949 = vrsqrt.pop %v917
        %v950 = vrsqrt.pop %v918
        %v951 = vrsqrt.pop %v919
        %v952 = vrsqrt.pop %v920
        %v953 = vrsqrt.pop %v921
        %v954 = vrsqrt.pop %v922
        %v955 = vrsqrt.pop %v923
        %v956 = vrsqrt.pop %v924
        %v957 = vrsqrt.pop %v925
        %v958 = vrsqrt.pop %v926
        %v959 = vrsqrt.pop %v927
        %v960 = vrsqrt.pop %v928
        %v961 = vrsqrt.pop %v929
        %v962 = vrsqrt.pop %v930
        %v963 = vrsqrt.pop %v931
        %v964 = vrsqrt.pop %v932
        %v965 = vrsqrt.pop %v933
        %v966 = vrsqrt.pop %v934
        %v967 = vrsqrt.pop %v935
        %v968 = vrsqrt.pop %v936
        %v969 = vrsqrt.pop %v937
        %v970 = vrsqrt.pop %v938
        %v971 = vmul.f32 %v746, %v939
        %v972 = vmul.f32 %v747, %v940
        %v973 = vmul.f32 %v748, %v941
        %v974 = vmul.f32 %v749, %v942
        %v975 = vmul.f32 %v750, %v943
        %v976 = vmul.f32 %v751, %v944
        %v977 = vmul.f32 %v752, %v945
        %v978 = vmul.f32 %v753, %v946
        %v979 = vmul.f32 %v754, %v947
        %v980 = vmul.f32 %v755, %v948
        %v981 = vmul.f32 %v756, %v949
        %v982 = vmul.f32 %v757, %v950
        %v983 = vmul.f32 %v758, %v951
        %v984 = vmul.f32 %v759, %v952
        %v985 = vmul.f32 %v760, %v953
        %v986 = vmul.f32 %v761, %v954
        %v987 = vmul.f32 %v762, %v955
        %v988 = vmul.f32 %v763, %v956
        %v989 = vmul.f32 %v764, %v957
        %v990 = vmul.f32 %v765, %v958
        %v991 = vmul.f32 %v766, %v959
        %v992 = vmul.f32 %v767, %v960
        %v993 = vmul.f32 %v768, %v961
        %v994 = vmul.f32 %v769, %v962
        %v995 = vmul.f32 %v770, %v963
        %v996 = vmul.f32 %v771, %v964
        %v997 = vmul.f32 %v772, %v965
        %v998 = vmul.f32 %v773, %v966
        %v999 = vmul.f32 %v774, %v967
        %v1000 = vmul.f32 %v775, %v968
        %v1001 = vmul.f32 %v776, %v969
        %v1002 = vmul.f32 %v777, %v970
        %v1003 = vpack.c.bf16 %v972, %v971
        %v1004 = vpack.c.bf16 %v974, %v973
        %v1005 = vpack.c.bf16 %v976, %v975
        %v1006 = vpack.c.bf16 %v978, %v977
        %v1007 = vpack.c.bf16 %v980, %v979
        %v1008 = vpack.c.bf16 %v982, %v981
        %v1009 = vpack.c.bf16 %v984, %v983
        %v1010 = vpack.c.bf16 %v986, %v985
        %v1011 = vpack.c.bf16 %v988, %v987
        %v1012 = vpack.c.bf16 %v990, %v989
        %v1013 = vpack.c.bf16 %v992, %v991
        %v1014 = vpack.c.bf16 %v994, %v993
        %v1015 = vpack.c.bf16 %v996, %v995
        %v1016 = vpack.c.bf16 %v998, %v997
        %v1017 = vpack.c.bf16 %v1000, %v999
        %v1018 = vpack.c.bf16 %v1002, %v1001
        %v1019 = vld [vmem:[%s2] sm:$0x1]
        %v1021 = vpack.i.b16 %v1019, %v1019
        %v1023 = vlaneseq
        %v1024 = vshrl.u32 %v1023, 7
        %v1025 = vsub.s32 0, %v1024
        %v1026 = vrot.slane %v1021, %v1025
        %v1027 = vmul.bf16 %v1003, %v1026
        %v1028 = vmul.bf16 %v1004, %v1026
        %v1029 = vmul.bf16 %v1005, %v1026
        %v1030 = vmul.bf16 %v1006, %v1026
        %v1031 = vmul.bf16 %v1007, %v1026
        %v1032 = vmul.bf16 %v1008, %v1026
        %v1033 = vmul.bf16 %v1009, %v1026
        %v1034 = vmul.bf16 %v1010, %v1026
        %v1035 = vmul.bf16 %v1011, %v1026
        %v1036 = vmul.bf16 %v1012, %v1026
        %v1037 = vmul.bf16 %v1013, %v1026
        %v1038 = vmul.bf16 %v1014, %v1026
        %v1039 = vmul.bf16 %v1015, %v1026
        %v1040 = vmul.bf16 %v1016, %v1026
        %v1041 = vmul.bf16 %v1017, %v1026
        %v1042 = vmul.bf16 %v1018, %v1026
        %v1043 = vld [vmem:[#allocation7] sm:$0xff]
        %v1044 = vld [vmem:[#allocation7 + $0x8] sm:$0xf]
        %v1045 = vld [vmem:[#allocation7 + $0xc] sm:$0xff]
        %v1046 = vld [vmem:[#allocation7 + $0x14] sm:$0xf]
        %v1047 = vld [vmem:[#allocation7 + $0x18] sm:$0xff]
        %v1048 = vld [vmem:[#allocation7 + $0x20] sm:$0xf]
        %v1049 = vld [vmem:[#allocation7 + $0x24] sm:$0xff]
        %v1050 = vld [vmem:[#allocation7 + $0x2c] sm:$0xf]
        %v1051 = vld [vmem:[#allocation7 + $0x30] sm:$0xff]
        %v1052 = vld [vmem:[#allocation7 + $0x38] sm:$0xf]
        %v1053 = vld [vmem:[#allocation7 + $0x3c] sm:$0xff]
        %v1054 = vld [vmem:[#allocation7 + $0x44] sm:$0xf]
        %v1055 = vld [vmem:[#allocation7 + $0x48] sm:$0xff]
        %v1056 = vld [vmem:[#allocation7 + $0x50] sm:$0xf]
        %v1057 = vld [vmem:[#allocation7 + $0x54] sm:$0xff]
        %v1058 = vld [vmem:[#allocation7 + $0x5c] sm:$0xf]
        %v1059 = vld [vmem:[#allocation7 + $0x60] sm:$0xff]
        %v1060 = vld [vmem:[#allocation7 + $0x68] sm:$0xf]
        %v1061 = vld [vmem:[#allocation7 + $0x6c] sm:$0xff]
        %v1062 = vld [vmem:[#allocation7 + $0x74] sm:$0xf]
        %v1063 = vld [vmem:[#allocation7 + $0x78] sm:$0xff]
        %v1064 = vld [vmem:[#allocation7 + $0x80] sm:$0xf]
        %v1065 = vld [vmem:[#allocation7 + $0x84] sm:$0xff]
        %v1066 = vld [vmem:[#allocation7 + $0x8c] sm:$0xf]
        %v1067 = vld [vmem:[#allocation7 + $0x90] sm:$0xff]
        %v1068 = vld [vmem:[#allocation7 + $0x98] sm:$0xf]
        %v1069 = vld [vmem:[#allocation7 + $0x9c] sm:$0xff]
        %v1070 = vld [vmem:[#allocation7 + $0xa4] sm:$0xf]
        %v1071 = vld [vmem:[#allocation7 + $0xa8] sm:$0xff]
        %v1072 = vld [vmem:[#allocation7 + $0xb0] sm:$0xf]
        %v1073 = vld [vmem:[#allocation7 + $0xb4] sm:$0xff]
        %v1074 = vld [vmem:[#allocation7 + $0xbc] sm:$0xf]
        %v1107 = vunpack.c.l.b16 %v1043
        %v1108 = vunpack.c.h.b16 %v1043
        %v1109 = vunpack.c.l.b16 %v1044
        %v1110 = vunpack.c.l.b16 %v1045
        %v1111 = vunpack.c.h.b16 %v1045
        %v1112 = vunpack.c.l.b16 %v1046
        %v1113 = vunpack.c.l.b16 %v1047
        %v1114 = vunpack.c.h.b16 %v1047
        %v1115 = vunpack.c.l.b16 %v1048
        %v1116 = vunpack.c.l.b16 %v1049
        %v1117 = vunpack.c.h.b16 %v1049
        %v1118 = vunpack.c.l.b16 %v1050
        %v1119 = vunpack.c.l.b16 %v1051
        %v1120 = vunpack.c.h.b16 %v1051
        %v1121 = vunpack.c.l.b16 %v1052
        %v1122 = vunpack.c.l.b16 %v1053
        %v1123 = vunpack.c.h.b16 %v1053
        %v1124 = vunpack.c.l.b16 %v1054
        %v1125 = vunpack.c.l.b16 %v1055
        %v1126 = vunpack.c.h.b16 %v1055
        %v1127 = vunpack.c.l.b16 %v1056
        %v1128 = vunpack.c.l.b16 %v1057
        %v1129 = vunpack.c.h.b16 %v1057
        %v1130 = vunpack.c.l.b16 %v1058
        %v1131 = vunpack.c.l.b16 %v1059
        %v1132 = vunpack.c.h.b16 %v1059
        %v1133 = vunpack.c.l.b16 %v1060
        %v1134 = vunpack.c.l.b16 %v1061
        %v1135 = vunpack.c.h.b16 %v1061
        %v1136 = vunpack.c.l.b16 %v1062
        %v1137 = vunpack.c.l.b16 %v1063
        %v1138 = vunpack.c.h.b16 %v1063
        %v1139 = vunpack.c.l.b16 %v1064
        %v1140 = vunpack.c.l.b16 %v1065
        %v1141 = vunpack.c.h.b16 %v1065
        %v1142 = vunpack.c.l.b16 %v1066
        %v1143 = vunpack.c.l.b16 %v1067
        %v1144 = vunpack.c.h.b16 %v1067
        %v1145 = vunpack.c.l.b16 %v1068
        %v1146 = vunpack.c.l.b16 %v1069
        %v1147 = vunpack.c.h.b16 %v1069
        %v1148 = vunpack.c.l.b16 %v1070
        %v1149 = vunpack.c.l.b16 %v1071
        %v1150 = vunpack.c.h.b16 %v1071
        %v1151 = vunpack.c.l.b16 %v1072
        %v1152 = vunpack.c.l.b16 %v1073
        %v1153 = vunpack.c.h.b16 %v1073
        %v1154 = vunpack.c.l.b16 %v1074
        %v1155 = vpack.c.b16 %v1110, %v1107
        %v1156 = vpack.c.b16 %v1111, %v1108
        %v1157 = vpack.c.b16 %v1112, %v1109
        %v1158 = vpack.c.b16 %v1116, %v1113
        %v1159 = vpack.c.b16 %v1117, %v1114
        %v1160 = vpack.c.b16 %v1118, %v1115
        %v1161 = vpack.c.b16 %v1122, %v1119
        %v1162 = vpack.c.b16 %v1123, %v1120
        %v1163 = vpack.c.b16 %v1124, %v1121
        %v1164 = vpack.c.b16 %v1128, %v1125
        %v1165 = vpack.c.b16 %v1129, %v1126
        %v1166 = vpack.c.b16 %v1130, %v1127
        %v1167 = vpack.c.b16 %v1134, %v1131
        %v1168 = vpack.c.b16 %v1135, %v1132
        %v1169 = vpack.c.b16 %v1136, %v1133
        %v1170 = vpack.c.b16 %v1140, %v1137
        %v1171 = vpack.c.b16 %v1141, %v1138
        %v1172 = vpack.c.b16 %v1142, %v1139
        %v1173 = vpack.c.b16 %v1146, %v1143
        %v1174 = vpack.c.b16 %v1147, %v1144
        %v1175 = vpack.c.b16 %v1148, %v1145
        %v1176 = vpack.c.b16 %v1152, %v1149
        %v1177 = vpack.c.b16 %v1153, %v1150
        %v1178 = vpack.c.b16 %v1154, %v1151
        %1203 = vmatprep.subr.bf16.mxu0 %v1156
        %1204 = vmatpush1.bf16.msra.mxu0 %v1155
        %1205 = vmatprep.subr.bf16.mxu0 %v1159
        %1206 = vmatpush1.bf16.msra.mxu0 %v1158
        %1207 = vmatprep.subr.bf16.mxu0 %v1162
        %1208 = vmatpush1.bf16.msra.mxu0 %v1161
        %1209 = vmatprep.subr.bf16.mxu0 %v1165
        %1210 = vmatpush1.bf16.msra.mxu0 %v1164
        %1211 = vmatprep.subr.bf16.mxu0 %v1168
        %1212 = vmatpush1.bf16.msra.mxu0 %v1167
        %1213 = vmatprep.subr.bf16.mxu0 %v1171
        %1214 = vmatpush1.bf16.msra.mxu0 %v1170
        %1215 = vmatprep.subr.bf16.mxu0 %v1174
        %1216 = vmatpush1.bf16.msra.mxu0 %v1173
        %1217 = vmatprep.subr.bf16.mxu0 %v1177
        %1218 = vmatpush1.bf16.msra.mxu0 %v1176
        %1219 = vmatprep.subr.bf16.mxu0 0
        %1220 = vmatpush1.bf16.msra.mxu0 0
        %1221 = vmatprep.subr.bf16.mxu0 0
        %1222 = vmatpush1.bf16.msra.mxu0 0
        %1223 = vmatprep.subr.bf16.mxu0 0
        %1224 = vmatpush1.bf16.msra.mxu0 0
        %1225 = vmatprep.subr.bf16.mxu0 0
        %1226 = vmatpush1.bf16.msra.mxu0 0
        %1227 = vmatprep.subr.bf16.mxu0 0
        %1228 = vmatpush1.bf16.msra.mxu0 0
        %1229 = vmatprep.subr.bf16.mxu0 0
        %1230 = vmatpush1.bf16.msra.mxu0 0
        %1231 = vmatprep.subr.bf16.mxu0 0
        %1232 = vmatpush1.bf16.msra.mxu0 0
        %1233 = vmatprep.subr.bf16.mxu0 0
        %1234 = vmatpush1.bf16.msra.mxu0 0
        %1235 = vmatprep.mubr.bf16.mxu0 0
        %1236 = vmatmul.mubr.bf16.gmra.mrb[0].mxu0 %v1027
        %v1237 = vpop.f32.mrb[0].mxu0
        %v1238 = vadd.f32 0.0, %v1237
        %v1239 = vpop.f32.mrb[0].mxu0
        %v1240 = vadd.f32 0.0, %v1239
        %v1241 = vpop.f32.mrb[0].mxu0
        %v1242 = vadd.f32 0.0, %v1241
        %v1243 = vpop.f32.mrb[0].mxu0
        %v1244 = vadd.f32 0.0, %v1243
        %1245 = vmatprep.mubr.bf16.mxu0 0
        %1246 = vmatmul.mubr.bf16.gmra.mrb[0].mxu0 %v1028
        %v1247 = vpop.f32.mrb[0].mxu0
        %v1248 = vadd.f32 0.0, %v1247
        %v1249 = vpop.f32.mrb[0].mxu0
        %v1250 = vadd.f32 0.0, %v1249
        %v1251 = vpop.f32.mrb[0].mxu0
        %v1252 = vadd.f32 0.0, %v1251
        %v1253 = vpop.f32.mrb[0].mxu0
        %v1254 = vadd.f32 0.0, %v1253
        %1255 = vmatprep.mubr.bf16.mxu0 0
        %1256 = vmatmul.mubr.bf16.gmra.mrb[0].mxu0 %v1029
        %v1257 = vpop.f32.mrb[0].mxu0
        %v1258 = vadd.f32 0.0, %v1257
        %v1259 = vpop.f32.mrb[0].mxu0
        %v1260 = vadd.f32 0.0, %v1259
        %v1261 = vpop.f32.mrb[0].mxu0
        %v1262 = vadd.f32 0.0, %v1261
        %v1263 = vpop.f32.mrb[0].mxu0
        %v1264 = vadd.f32 0.0, %v1263
        %1265 = vmatprep.mubr.bf16.mxu0 0
        %1266 = vmatmul.mubr.bf16.gmra.mrb[0].mxu0 %v1030
        %v1267 = vpop.f32.mrb[0].mxu0
        %v1268 = vadd.f32 0.0, %v1267
        %v1269 = vpop.f32.mrb[0].mxu0
        %v1270 = vadd.f32 0.0, %v1269
        %v1271 = vpop.f32.mrb[0].mxu0
        %v1272 = vadd.f32 0.0, %v1271
        %v1273 = vpop.f32.mrb[0].mxu0
        %v1274 = vadd.f32 0.0, %v1273
        %1275 = vmatprep.mubr.bf16.mxu0 0
        %1276 = vmatmul.mubr.bf16.gmra.mrb[0].mxu0 %v1031
        %v1277 = vpop.f32.mrb[0].mxu0
        %v1278 = vadd.f32 0.0, %v1277
        %v1279 = vpop.f32.mrb[0].mxu0
        %v1280 = vadd.f32 0.0, %v1279
        %v1281 = vpop.f32.mrb[0].mxu0
        %v1282 = vadd.f32 0.0, %v1281
        %v1283 = vpop.f32.mrb[0].mxu0
        %v1284 = vadd.f32 0.0, %v1283
        %1285 = vmatprep.mubr.bf16.mxu0 0
        %1286 = vmatmul.mubr.bf16.gmra.mrb[0].mxu0 %v1032
        %v1287 = vpop.f32.mrb[0].mxu0
        %v1288 = vadd.f32 0.0, %v1287
        %v1289 = vpop.f32.mrb[0].mxu0
        %v1290 = vadd.f32 0.0, %v1289
        %v1291 = vpop.f32.mrb[0].mxu0
        %v1292 = vadd.f32 0.0, %v1291
        %v1293 = vpop.f32.mrb[0].mxu0
        %v1294 = vadd.f32 0.0, %v1293
        %1295 = vmatprep.mubr.bf16.mxu0 0
        %1296 = vmatmul.mubr.bf16.gmra.mrb[0].mxu0 %v1033
        %v1297 = vpop.f32.mrb[0].mxu0
        %v1298 = vadd.f32 0.0, %v1297
        %v1299 = vpop.f32.mrb[0].mxu0
        %v1300 = vadd.f32 0.0, %v1299
        %v1301 = vpop.f32.mrb[0].mxu0
        %v1302 = vadd.f32 0.0, %v1301
        %v1303 = vpop.f32.mrb[0].mxu0
        %v1304 = vadd.f32 0.0, %v1303
        %1305 = vmatprep.mubr.bf16.mxu0 0
        %1306 = vmatmul.mubr.bf16.gmra.mrb[0].mxu0 %v1034
        %v1307 = vpop.f32.mrb[0].mxu0
        %v1308 = vadd.f32 0.0, %v1307
        %v1309 = vpop.f32.mrb[0].mxu0
        %v1310 = vadd.f32 0.0, %v1309
        %v1311 = vpop.f32.mrb[0].mxu0
        %v1312 = vadd.f32 0.0, %v1311
        %v1313 = vpop.f32.mrb[0].mxu0
        %v1314 = vadd.f32 0.0, %v1313
        %1315 = vmatprep.mubr.bf16.mxu0 0
        %1316 = vmatmul.mubr.bf16.gmra.mrb[0].mxu0 %v1035
        %v1317 = vpop.f32.mrb[0].mxu0
        %v1318 = vadd.f32 0.0, %v1317
        %v1319 = vpop.f32.mrb[0].mxu0
        %v1320 = vadd.f32 0.0, %v1319
        %v1321 = vpop.f32.mrb[0].mxu0
        %v1322 = vadd.f32 0.0, %v1321
        %v1323 = vpop.f32.mrb[0].mxu0
        %v1324 = vadd.f32 0.0, %v1323
        %1325 = vmatprep.mubr.bf16.mxu0 0
        %1326 = vmatmul.mubr.bf16.gmra.mrb[0].mxu0 %v1036
        %v1327 = vpop.f32.mrb[0].mxu0
        %v1328 = vadd.f32 0.0, %v1327
        %v1329 = vpop.f32.mrb[0].mxu0
        %v1330 = vadd.f32 0.0, %v1329
        %v1331 = vpop.f32.mrb[0].mxu0
        %v1332 = vadd.f32 0.0, %v1331
        %v1333 = vpop.f32.mrb[0].mxu0
        %v1334 = vadd.f32 0.0, %v1333
        %1335 = vmatprep.mubr.bf16.mxu0 0
        %1336 = vmatmul.mubr.bf16.gmra.mrb[0].mxu0 %v1037
        %v1337 = vpop.f32.mrb[0].mxu0
        %v1338 = vadd.f32 0.0, %v1337
        %v1339 = vpop.f32.mrb[0].mxu0
        %v1340 = vadd.f32 0.0, %v1339
        %v1341 = vpop.f32.mrb[0].mxu0
        %v1342 = vadd.f32 0.0, %v1341
        %v1343 = vpop.f32.mrb[0].mxu0
        %v1344 = vadd.f32 0.0, %v1343
        %1345 = vmatprep.mubr.bf16.mxu0 0
        %1346 = vmatmul.mubr.bf16.gmra.mrb[0].mxu0 %v1038
        %v1347 = vpop.f32.mrb[0].mxu0
        %v1348 = vadd.f32 0.0, %v1347
        %v1349 = vpop.f32.mrb[0].mxu0
        %v1350 = vadd.f32 0.0, %v1349
        %v1351 = vpop.f32.mrb[0].mxu0
        %v1352 = vadd.f32 0.0, %v1351
        %v1353 = vpop.f32.mrb[0].mxu0
        %v1354 = vadd.f32 0.0, %v1353
        %1355 = vmatprep.mubr.bf16.mxu0 0
        %1356 = vmatmul.mubr.bf16.gmra.mrb[0].mxu0 %v1039
        %v1357 = vpop.f32.mrb[0].mxu0
        %v1358 = vadd.f32 0.0, %v1357
        %v1359 = vpop.f32.mrb[0].mxu0
        %v1360 = vadd.f32 0.0, %v1359
        %v1361 = vpop.f32.mrb[0].mxu0
        %v1362 = vadd.f32 0.0, %v1361
        %v1363 = vpop.f32.mrb[0].mxu0
        %v1364 = vadd.f32 0.0, %v1363
        %1365 = vmatprep.mubr.bf16.mxu0 0
        %1366 = vmatmul.mubr.bf16.gmra.mrb[0].mxu0 %v1040
        %v1367 = vpop.f32.mrb[0].mxu0
        %v1368 = vadd.f32 0.0, %v1367
        %v1369 = vpop.f32.mrb[0].mxu0
        %v1370 = vadd.f32 0.0, %v1369
        %v1371 = vpop.f32.mrb[0].mxu0
        %v1372 = vadd.f32 0.0, %v1371
        %v1373 = vpop.f32.mrb[0].mxu0
        %v1374 = vadd.f32 0.0, %v1373
        %1375 = vmatprep.mubr.bf16.mxu0 0
        %1376 = vmatmul.mubr.bf16.gmra.mrb[0].mxu0 %v1041
        %v1377 = vpop.f32.mrb[0].mxu0
        %v1378 = vadd.f32 0.0, %v1377
        %v1379 = vpop.f32.mrb[0].mxu0
        %v1380 = vadd.f32 0.0, %v1379
        %v1381 = vpop.f32.mrb[0].mxu0
        %v1382 = vadd.f32 0.0, %v1381
        %v1383 = vpop.f32.mrb[0].mxu0
        %v1384 = vadd.f32 0.0, %v1383
        %1385 = vmatprep.mubr.bf16.mxu0 0
        %1386 = vmatmul.mubr.bf16.gmra.mrb[0].mxu0 %v1042
        %v1387 = vpop.f32.mrb[0].mxu0
        %v1388 = vadd.f32 0.0, %v1387
        %v1389 = vpop.f32.mrb[0].mxu0
        %v1390 = vadd.f32 0.0, %v1389
        %v1391 = vpop.f32.mrb[0].mxu0
        %v1392 = vadd.f32 0.0, %v1391
        %v1393 = vpop.f32.mrb[0].mxu0
        %v1394 = vadd.f32 0.0, %v1393
        %1395 = vdwg.mxu0
        %1396 = vmatprep.subr.bf16.mxu0 0
        %1397 = vmatpush1.bf16.msra.mxu0 %v1157
        %1398 = vmatprep.subr.bf16.mxu0 0
        %1399 = vmatpush1.bf16.msra.mxu0 %v1160
        %1400 = vmatprep.subr.bf16.mxu0 0
        %1401 = vmatpush1.bf16.msra.mxu0 %v1163
        %1402 = vmatprep.subr.bf16.mxu0 0
        %1403 = vmatpush1.bf16.msra.mxu0 %v1166
        %1404 = vmatprep.subr.bf16.mxu0 0
        %1405 = vmatpush1.bf16.msra.mxu0 %v1169
        %1406 = vmatprep.subr.bf16.mxu0 0
        %1407 = vmatpush1.bf16.msra.mxu0 %v1172
        %1408 = vmatprep.subr.bf16.mxu0 0
        %1409 = vmatpush1.bf16.msra.mxu0 %v1175
        %1410 = vmatprep.subr.bf16.mxu0 0
        %1411 = vmatpush1.bf16.msra.mxu0 %v1178
        %1412 = vmatprep.subr.bf16.mxu0 0
        %1413 = vmatpush1.bf16.msra.mxu0 0
        %1414 = vmatprep.subr.bf16.mxu0 0
        %1415 = vmatpush1.bf16.msra.mxu0 0
        %1416 = vmatprep.subr.bf16.mxu0 0
        %1417 = vmatpush1.bf16.msra.mxu0 0
        %1418 = vmatprep.subr.bf16.mxu0 0
        %1419 = vmatpush1.bf16.msra.mxu0 0
        %1420 = vmatprep.subr.bf16.mxu0 0
        %1421 = vmatpush1.bf16.msra.mxu0 0
        %1422 = vmatprep.subr.bf16.mxu0 0
        %1423 = vmatpush1.bf16.msra.mxu0 0
        %1424 = vmatprep.subr.bf16.mxu0 0
        %1425 = vmatpush1.bf16.msra.mxu0 0
        %1426 = vmatprep.subr.bf16.mxu0 0
        %1427 = vmatpush1.bf16.msra.mxu0 0
        %1428 = vmatprep.mubr.bf16.mxu0 0
        %1429 = vmatmul.mubr.bf16.gmra.mrb[0].mxu0 %v1027
        %v1430 = vpop.f32.mrb[0].mxu0
        %v1431 = vadd.f32 0.0, %v1430
        %v1432 = vpop.f32.mrb[0].mxu0
        %v1433 = vpop.f32.mrb[0].mxu0
        %v1434 = vadd.f32 0.0, %v1433
        %v1435 = vpop.f32.mrb[0].mxu0
        %1436 = vmatprep.mubr.bf16.mxu0 0
        %1437 = vmatmul.mubr.bf16.gmra.mrb[0].mxu0 %v1028
        %v1438 = vpop.f32.mrb[0].mxu0
        %v1439 = vadd.f32 0.0, %v1438
        %v1440 = vpop.f32.mrb[0].mxu0
        %v1441 = vpop.f32.mrb[0].mxu0
        %v1442 = vadd.f32 0.0, %v1441
        %v1443 = vpop.f32.mrb[0].mxu0
        %1444 = vmatprep.mubr.bf16.mxu0 0
        %1445 = vmatmul.mubr.bf16.gmra.mrb[0].mxu0 %v1029
        %v1446 = vpop.f32.mrb[0].mxu0
        %v1447 = vadd.f32 0.0, %v1446
        %v1448 = vpop.f32.mrb[0].mxu0
        %v1449 = vpop.f32.mrb[0].mxu0
        %v1450 = vadd.f32 0.0, %v1449
        %v1451 = vpop.f32.mrb[0].mxu0
        %1452 = vmatprep.mubr.bf16.mxu0 0
        %1453 = vmatmul.mubr.bf16.gmra.mrb[0].mxu0 %v1030
        %v1454 = vpop.f32.mrb[0].mxu0
        %v1455 = vadd.f32 0.0, %v1454
        %v1456 = vpop.f32.mrb[0].mxu0
        %v1457 = vpop.f32.mrb[0].mxu0
        %v1458 = vadd.f32 0.0, %v1457
        %v1459 = vpop.f32.mrb[0].mxu0
        %1460 = vmatprep.mubr.bf16.mxu0 0
        %1461 = vmatmul.mubr.bf16.gmra.mrb[0].mxu0 %v1031
        %v1462 = vpop.f32.mrb[0].mxu0
        %v1463 = vadd.f32 0.0, %v1462
        %v1464 = vpop.f32.mrb[0].mxu0
        %v1465 = vpop.f32.mrb[0].mxu0
        %v1466 = vadd.f32 0.0, %v1465
        %v1467 = vpop.f32.mrb[0].mxu0
        %1468 = vmatprep.mubr.bf16.mxu0 0
        %1469 = vmatmul.mubr.bf16.gmra.mrb[0].mxu0 %v1032
        %v1470 = vpop.f32.mrb[0].mxu0
        %v1471 = vadd.f32 0.0, %v1470
        %v1472 = vpop.f32.mrb[0].mxu0
        %v1473 = vpop.f32.mrb[0].mxu0
        %v1474 = vadd.f32 0.0, %v1473
        %v1475 = vpop.f32.mrb[0].mxu0
        %1476 = vmatprep.mubr.bf16.mxu0 0
        %1477 = vmatmul.mubr.bf16.gmra.mrb[0].mxu0 %v1033
        %v1478 = vpop.f32.mrb[0].mxu0
        %v1479 = vadd.f32 0.0, %v1478
        %v1480 = vpop.f32.mrb[0].mxu0
        %v1481 = vpop.f32.mrb[0].mxu0
        %v1482 = vadd.f32 0.0, %v1481
        %v1483 = vpop.f32.mrb[0].mxu0
        %1484 = vmatprep.mubr.bf16.mxu0 0
        %1485 = vmatmul.mubr.bf16.gmra.mrb[0].mxu0 %v1034
        %v1486 = vpop.f32.mrb[0].mxu0
        %v1487 = vadd.f32 0.0, %v1486
        %v1488 = vpop.f32.mrb[0].mxu0
        %v1489 = vpop.f32.mrb[0].mxu0
        %v1490 = vadd.f32 0.0, %v1489
        %v1491 = vpop.f32.mrb[0].mxu0
        %1492 = vmatprep.mubr.bf16.mxu0 0
        %1493 = vmatmul.mubr.bf16.gmra.mrb[0].mxu0 %v1035
        %v1494 = vpop.f32.mrb[0].mxu0
        %v1495 = vadd.f32 0.0, %v1494
        %v1496 = vpop.f32.mrb[0].mxu0
        %v1497 = vpop.f32.mrb[0].mxu0
        %v1498 = vadd.f32 0.0, %v1497
        %v1499 = vpop.f32.mrb[0].mxu0
        %1500 = vmatprep.mubr.bf16.mxu0 0
        %1501 = vmatmul.mubr.bf16.gmra.mrb[0].mxu0 %v1036
        %v1502 = vpop.f32.mrb[0].mxu0
        %v1503 = vadd.f32 0.0, %v1502
        %v1504 = vpop.f32.mrb[0].mxu0
        %v1505 = vpop.f32.mrb[0].mxu0
        %v1506 = vadd.f32 0.0, %v1505
        %v1507 = vpop.f32.mrb[0].mxu0
        %1508 = vmatprep.mubr.bf16.mxu0 0
        %1509 = vmatmul.mubr.bf16.gmra.mrb[0].mxu0 %v1037
        %v1510 = vpop.f32.mrb[0].mxu0
        %v1511 = vadd.f32 0.0, %v1510
        %v1512 = vpop.f32.mrb[0].mxu0
        %v1513 = vpop.f32.mrb[0].mxu0
        %v1514 = vadd.f32 0.0, %v1513
        %v1515 = vpop.f32.mrb[0].mxu0
        %1516 = vmatprep.mubr.bf16.mxu0 0
        %1517 = vmatmul.mubr.bf16.gmra.mrb[0].mxu0 %v1038
        %v1518 = vpop.f32.mrb[0].mxu0
        %v1519 = vadd.f32 0.0, %v1518
        %v1520 = vpop.f32.mrb[0].mxu0
        %v1521 = vpop.f32.mrb[0].mxu0
        %v1522 = vadd.f32 0.0, %v1521
        %v1523 = vpop.f32.mrb[0].mxu0
        %1524 = vmatprep.mubr.bf16.mxu0 0
        %1525 = vmatmul.mubr.bf16.gmra.mrb[0].mxu0 %v1039
        %v1526 = vpop.f32.mrb[0].mxu0
        %v1527 = vadd.f32 0.0, %v1526
        %v1528 = vpop.f32.mrb[0].mxu0
        %v1529 = vpop.f32.mrb[0].mxu0
        %v1530 = vadd.f32 0.0, %v1529
        %v1531 = vpop.f32.mrb[0].mxu0
        %1532 = vmatprep.mubr.bf16.mxu0 0
        %1533 = vmatmul.mubr.bf16.gmra.mrb[0].mxu0 %v1040
        %v1534 = vpop.f32.mrb[0].mxu0
        %v1535 = vadd.f32 0.0, %v1534
        %v1536 = vpop.f32.mrb[0].mxu0
        %v1537 = vpop.f32.mrb[0].mxu0
        %v1538 = vadd.f32 0.0, %v1537
        %v1539 = vpop.f32.mrb[0].mxu0
        %1540 = vmatprep.mubr.bf16.mxu0 0
        %1541 = vmatmul.mubr.bf16.gmra.mrb[0].mxu0 %v1041
        %v1542 = vpop.f32.mrb[0].mxu0
        %v1543 = vadd.f32 0.0, %v1542
        %v1544 = vpop.f32.mrb[0].mxu0
        %v1545 = vpop.f32.mrb[0].mxu0
        %v1546 = vadd.f32 0.0, %v1545
        %v1547 = vpop.f32.mrb[0].mxu0
        %1548 = vmatprep.mubr.bf16.mxu0 0
        %1549 = vmatmul.mubr.bf16.gmra.mrb[0].mxu0 %v1042
        %v1550 = vpop.f32.mrb[0].mxu0
        %v1551 = vadd.f32 0.0, %v1550
        %v1552 = vpop.f32.mrb[0].mxu0
        %v1553 = vpop.f32.mrb[0].mxu0
        %v1554 = vadd.f32 0.0, %v1553
        %v1555 = vpop.f32.mrb[0].mxu0
        %1556 = vdwg.mxu0
        %v1557 = vpack.c.bf16 %v1242, %v1238
        %v1558 = vpack.c.bf16 %v1244, %v1240
        %v1559 = vpack.c.bf16 %v1434, %v1431
        %v1560 = vpack.c.bf16 %v1252, %v1248
        %v1561 = vpack.c.bf16 %v1254, %v1250
        %v1562 = vpack.c.bf16 %v1442, %v1439
        %v1563 = vpack.c.bf16 %v1262, %v1258
        %v1564 = vpack.c.bf16 %v1264, %v1260
        %v1565 = vpack.c.bf16 %v1450, %v1447
        %v1566 = vpack.c.bf16 %v1272, %v1268
        %v1567 = vpack.c.bf16 %v1274, %v1270
        %v1568 = vpack.c.bf16 %v1458, %v1455
        %v1569 = vpack.c.bf16 %v1282, %v1278
        %v1570 = vpack.c.bf16 %v1284, %v1280
        %v1571 = vpack.c.bf16 %v1466, %v1463
        %v1572 = vpack.c.bf16 %v1292, %v1288
        %v1573 = vpack.c.bf16 %v1294, %v1290
        %v1574 = vpack.c.bf16 %v1474, %v1471
        %v1575 = vpack.c.bf16 %v1302, %v1298
        %v1576 = vpack.c.bf16 %v1304, %v1300
        %v1577 = vpack.c.bf16 %v1482, %v1479
        %v1578 = vpack.c.bf16 %v1312, %v1308
        %v1579 = vpack.c.bf16 %v1314, %v1310
        %v1580 = vpack.c.bf16 %v1490, %v1487
        %v1581 = vpack.c.bf16 %v1322, %v1318
        %v1582 = vpack.c.bf16 %v1324, %v1320
        %v1583 = vpack.c.bf16 %v1498, %v1495
        %v1584 = vpack.c.bf16 %v1332, %v1328
        %v1585 = vpack.c.bf16 %v1334, %v1330
        %v1586 = vpack.c.bf16 %v1506, %v1503
        %v1587 = vpack.c.bf16 %v1342, %v1338
        %v1588 = vpack.c.bf16 %v1344, %v1340
        %v1589 = vpack.c.bf16 %v1514, %v1511
        %v1590 = vpack.c.bf16 %v1352, %v1348
        %v1591 = vpack.c.bf16 %v1354, %v1350
        %v1592 = vpack.c.bf16 %v1522, %v1519
        %v1593 = vpack.c.bf16 %v1362, %v1358
        %v1594 = vpack.c.bf16 %v1364, %v1360
        %v1595 = vpack.c.bf16 %v1530, %v1527
        %v1596 = vpack.c.bf16 %v1372, %v1368
        %v1597 = vpack.c.bf16 %v1374, %v1370
        %v1598 = vpack.c.bf16 %v1538, %v1535
        %v1599 = vpack.c.bf16 %v1382, %v1378
        %v1600 = vpack.c.bf16 %v1384, %v1380
        %v1601 = vpack.c.bf16 %v1546, %v1543
        %v1602 = vpack.c.bf16 %v1392, %v1388
        %v1603 = vpack.c.bf16 %v1394, %v1390
        %v1604 = vpack.c.bf16 %v1554, %v1551
        %v1653 = vunpack.c.l.b16 %v1557
        %v1654 = vunpack.c.l.b16 %v1558
        %v1655 = vunpack.c.l.b16 %v1559
        %v1656 = vunpack.c.h.b16 %v1557
        %v1657 = vunpack.c.h.b16 %v1558
        %v1658 = vunpack.c.h.b16 %v1559
        %v1659 = vunpack.c.l.b16 %v1560
        %v1660 = vunpack.c.l.b16 %v1561
        %v1661 = vunpack.c.l.b16 %v1562
        %v1662 = vunpack.c.h.b16 %v1560
        %v1663 = vunpack.c.h.b16 %v1561
        %v1664 = vunpack.c.h.b16 %v1562
        %v1665 = vunpack.c.l.b16 %v1563
        %v1666 = vunpack.c.l.b16 %v1564
        %v1667 = vunpack.c.l.b16 %v1565
        %v1668 = vunpack.c.h.b16 %v1563
        %v1669 = vunpack.c.h.b16 %v1564
        %v1670 = vunpack.c.h.b16 %v1565
        %v1671 = vunpack.c.l.b16 %v1566
        %v1672 = vunpack.c.l.b16 %v1567
        %v1673 = vunpack.c.l.b16 %v1568
        %v1674 = vunpack.c.h.b16 %v1566
        %v1675 = vunpack.c.h.b16 %v1567
        %v1676 = vunpack.c.h.b16 %v1568
        %v1677 = vunpack.c.l.b16 %v1569
        %v1678 = vunpack.c.l.b16 %v1570
        %v1679 = vunpack.c.l.b16 %v1571
        %v1680 = vunpack.c.h.b16 %v1569
        %v1681 = vunpack.c.h.b16 %v1570
        %v1682 = vunpack.c.h.b16 %v1571
        %v1683 = vunpack.c.l.b16 %v1572
        %v1684 = vunpack.c.l.b16 %v1573
        %v1685 = vunpack.c.l.b16 %v1574
        %v1686 = vunpack.c.h.b16 %v1572
        %v1687 = vunpack.c.h.b16 %v1573
        %v1688 = vunpack.c.h.b16 %v1574
        %v1689 = vunpack.c.l.b16 %v1575
        %v1690 = vunpack.c.l.b16 %v1576
        %v1691 = vunpack.c.l.b16 %v1577
        %v1692 = vunpack.c.h.b16 %v1575
        %v1693 = vunpack.c.h.b16 %v1576
        %v1694 = vunpack.c.h.b16 %v1577
        %v1695 = vunpack.c.l.b16 %v1578
        %v1696 = vunpack.c.l.b16 %v1579
        %v1697 = vunpack.c.l.b16 %v1580
        %v1698 = vunpack.c.h.b16 %v1578
        %v1699 = vunpack.c.h.b16 %v1579
        %v1700 = vunpack.c.h.b16 %v1580
        %v1701 = vunpack.c.l.b16 %v1581
        %v1702 = vunpack.c.l.b16 %v1582
        %v1703 = vunpack.c.l.b16 %v1583
        %v1704 = vunpack.c.h.b16 %v1581
        %v1705 = vunpack.c.h.b16 %v1582
        %v1706 = vunpack.c.h.b16 %v1583
        %v1707 = vunpack.c.l.b16 %v1584
        %v1708 = vunpack.c.l.b16 %v1585
        %v1709 = vunpack.c.l.b16 %v1586
        %v1710 = vunpack.c.h.b16 %v1584
        %v1711 = vunpack.c.h.b16 %v1585
        %v1712 = vunpack.c.h.b16 %v1586
        %v1713 = vunpack.c.l.b16 %v1587
        %v1714 = vunpack.c.l.b16 %v1588
        %v1715 = vunpack.c.l.b16 %v1589
        %v1716 = vunpack.c.h.b16 %v1587
        %v1717 = vunpack.c.h.b16 %v1588
        %v1718 = vunpack.c.h.b16 %v1589
        %v1719 = vunpack.c.l.b16 %v1590
        %v1720 = vunpack.c.l.b16 %v1591
        %v1721 = vunpack.c.l.b16 %v1592
        %v1722 = vunpack.c.h.b16 %v1590
        %v1723 = vunpack.c.h.b16 %v1591
        %v1724 = vunpack.c.h.b16 %v1592
        %v1725 = vunpack.c.l.b16 %v1593
        %v1726 = vunpack.c.l.b16 %v1594
        %v1727 = vunpack.c.l.b16 %v1595
        %v1728 = vunpack.c.h.b16 %v1593
        %v1729 = vunpack.c.h.b16 %v1594
        %v1730 = vunpack.c.h.b16 %v1595
        %v1731 = vunpack.c.l.b16 %v1596
        %v1732 = vunpack.c.l.b16 %v1597
        %v1733 = vunpack.c.l.b16 %v1598
        %v1734 = vunpack.c.h.b16 %v1596
        %v1735 = vunpack.c.h.b16 %v1597
        %v1736 = vunpack.c.h.b16 %v1598
        %v1737 = vunpack.c.l.b16 %v1599
        %v1738 = vunpack.c.l.b16 %v1600
        %v1739 = vunpack.c.l.b16 %v1601
        %v1740 = vunpack.c.h.b16 %v1599
        %v1741 = vunpack.c.h.b16 %v1600
        %v1742 = vunpack.c.h.b16 %v1601
        %v1743 = vunpack.c.l.b16 %v1602
        %v1744 = vunpack.c.l.b16 %v1603
        %v1745 = vunpack.c.l.b16 %v1604
        %v1746 = vunpack.c.h.b16 %v1602
        %v1747 = vunpack.c.h.b16 %v1603
        %v1748 = vunpack.c.h.b16 %v1604
        %v1749 = vpack.c.b16 %v1654, %v1653
        %v1750 = vpack.c.b16 %v1655, %v1655
        %v1751 = vpack.c.b16 %v1657, %v1656
        %v1752 = vpack.c.b16 %v1658, %v1658
        %v1753 = vpack.c.b16 %v1660, %v1659
        %v1754 = vpack.c.b16 %v1661, %v1661
        %v1755 = vpack.c.b16 %v1663, %v1662
        %v1756 = vpack.c.b16 %v1664, %v1664
        %v1757 = vpack.c.b16 %v1666, %v1665
        %v1758 = vpack.c.b16 %v1667, %v1667
        %v1759 = vpack.c.b16 %v1669, %v1668
        %v1760 = vpack.c.b16 %v1670, %v1670
        %v1761 = vpack.c.b16 %v1672, %v1671
        %v1762 = vpack.c.b16 %v1673, %v1673
        %v1763 = vpack.c.b16 %v1675, %v1674
        %v1764 = vpack.c.b16 %v1676, %v1676
        %v1765 = vpack.c.b16 %v1678, %v1677
        %v1766 = vpack.c.b16 %v1679, %v1679
        %v1767 = vpack.c.b16 %v1681, %v1680
        %v1768 = vpack.c.b16 %v1682, %v1682
        %v1769 = vpack.c.b16 %v1684, %v1683
        %v1770 = vpack.c.b16 %v1685, %v1685
        %v1771 = vpack.c.b16 %v1687, %v1686
        %v1772 = vpack.c.b16 %v1688, %v1688
        %v1773 = vpack.c.b16 %v1690, %v1689
        %v1774 = vpack.c.b16 %v1691, %v1691
        %v1775 = vpack.c.b16 %v1693, %v1692
        %v1776 = vpack.c.b16 %v1694, %v1694
        %v1777 = vpack.c.b16 %v1696, %v1695
        %v1778 = vpack.c.b16 %v1697, %v1697
        %v1779 = vpack.c.b16 %v1699, %v1698
        %v1780 = vpack.c.b16 %v1700, %v1700
        %v1781 = vpack.c.b16 %v1702, %v1701
        %v1782 = vpack.c.b16 %v1703, %v1703
        %v1783 = vpack.c.b16 %v1705, %v1704
        %v1784 = vpack.c.b16 %v1706, %v1706
        %v1785 = vpack.c.b16 %v1708, %v1707
        %v1786 = vpack.c.b16 %v1709, %v1709
        %v1787 = vpack.c.b16 %v1711, %v1710
        %v1788 = vpack.c.b16 %v1712, %v1712
        %v1789 = vpack.c.b16 %v1714, %v1713
        %v1790 = vpack.c.b16 %v1715, %v1715
        %v1791 = vpack.c.b16 %v1717, %v1716
        %v1792 = vpack.c.b16 %v1718, %v1718
        %v1793 = vpack.c.b16 %v1720, %v1719
        %v1794 = vpack.c.b16 %v1721, %v1721
        %v1795 = vpack.c.b16 %v1723, %v1722
        %v1796 = vpack.c.b16 %v1724, %v1724
        %v1797 = vpack.c.b16 %v1726, %v1725
        %v1798 = vpack.c.b16 %v1727, %v1727
        %v1799 = vpack.c.b16 %v1729, %v1728
        %v1800 = vpack.c.b16 %v1730, %v1730
        %v1801 = vpack.c.b16 %v1732, %v1731
        %v1802 = vpack.c.b16 %v1733, %v1733
        %v1803 = vpack.c.b16 %v1735, %v1734
        %v1804 = vpack.c.b16 %v1736, %v1736
        %v1805 = vpack.c.b16 %v1738, %v1737
        %v1806 = vpack.c.b16 %v1739, %v1739
        %v1807 = vpack.c.b16 %v1741, %v1740
        %v1808 = vpack.c.b16 %v1742, %v1742
        %v1809 = vpack.c.b16 %v1744, %v1743
        %v1810 = vpack.c.b16 %v1745, %v1745
        %v1811 = vpack.c.b16 %v1747, %v1746
        %v1812 = vpack.c.b16 %v1748, %v1748
        %1877 = vst [vmem:[%s245] sm:$0xff] %v1749
        %1878 = vst [vmem:[%s245 + $0x8] sm:$0xf] %v1750
        %1879 = vst [vmem:[%s245 + $0xc] sm:$0xff] %v1751
        %1880 = vst [vmem:[%s245 + $0x14] sm:$0xf] %v1752
        %1881 = vst [vmem:[%s245 + $0x18] sm:$0xff] %v1753
        %1882 = vst [vmem:[%s245 + $0x20] sm:$0xf] %v1754
        %1883 = vst [vmem:[%s245 + $0x24] sm:$0xff] %v1755
        %1884 = vst [vmem:[%s245 + $0x2c] sm:$0xf] %v1756
        %1885 = vst [vmem:[%s245 + $0x30] sm:$0xff] %v1757
        %1886 = vst [vmem:[%s245 + $0x38] sm:$0xf] %v1758
        %1887 = vst [vmem:[%s245 + $0x3c] sm:$0xff] %v1759
        %1888 = vst [vmem:[%s245 + $0x44] sm:$0xf] %v1760
        %1889 = vst [vmem:[%s245 + $0x48] sm:$0xff] %v1761
        %1890 = vst [vmem:[%s245 + $0x50] sm:$0xf] %v1762
        %1891 = vst [vmem:[%s245 + $0x54] sm:$0xff] %v1763
        %1892 = vst [vmem:[%s245 + $0x5c] sm:$0xf] %v1764
        %1893 = vst [vmem:[%s245 + $0x60] sm:$0xff] %v1765
        %1894 = vst [vmem:[%s245 + $0x68] sm:$0xf] %v1766
        %1895 = vst [vmem:[%s245 + $0x6c] sm:$0xff] %v1767
        %1896 = vst [vmem:[%s245 + $0x74] sm:$0xf] %v1768
        %1897 = vst [vmem:[%s245 + $0x78] sm:$0xff] %v1769
        %1898 = vst [vmem:[%s245 + $0x80] sm:$0xf] %v1770
        %1899 = vst [vmem:[%s245 + $0x84] sm:$0xff] %v1771
        %1900 = vst [vmem:[%s245 + $0x8c] sm:$0xf] %v1772
        %1901 = vst [vmem:[%s245 + $0x90] sm:$0xff] %v1773
        %1902 = vst [vmem:[%s245 + $0x98] sm:$0xf] %v1774
        %1903 = vst [vmem:[%s245 + $0x9c] sm:$0xff] %v1775
        %1904 = vst [vmem:[%s245 + $0xa4] sm:$0xf] %v1776
        %1905 = vst [vmem:[%s245 + $0xa8] sm:$0xff] %v1777
        %1906 = vst [vmem:[%s245 + $0xb0] sm:$0xf] %v1778
        %1907 = vst [vmem:[%s245 + $0xb4] sm:$0xff] %v1779
        %1908 = vst [vmem:[%s245 + $0xbc] sm:$0xf] %v1780
        %1909 = vst [vmem:[%s245 + $0xc0] sm:$0xff] %v1781
        %1910 = vst [vmem:[%s245 + $0xc8] sm:$0xf] %v1782
        %1911 = vst [vmem:[%s245 + $0xcc] sm:$0xff] %v1783
        %1912 = vst [vmem:[%s245 + $0xd4] sm:$0xf] %v1784
        %1913 = vst [vmem:[%s245 + $0xd8] sm:$0xff] %v1785
        %1914 = vst [vmem:[%s245 + $0xe0] sm:$0xf] %v1786
        %1915 = vst [vmem:[%s245 + $0xe4] sm:$0xff] %v1787
        %1916 = vst [vmem:[%s245 + $0xec] sm:$0xf] %v1788
        %1917 = vst [vmem:[%s245 + $0xf0] sm:$0xff] %v1789
        %1918 = vst [vmem:[%s245 + $0xf8] sm:$0xf] %v1790
        %1919 = vst [vmem:[%s245 + $0xfc] sm:$0xff] %v1791
        %1920 = vst [vmem:[%s245 + $0x104] sm:$0xf] %v1792
        %1921 = vst [vmem:[%s245 + $0x108] sm:$0xff] %v1793
        %1922 = vst [vmem:[%s245 + $0x110] sm:$0xf] %v1794
        %1923 = vst [vmem:[%s245 + $0x114] sm:$0xff] %v1795
        %1924 = vst [vmem:[%s245 + $0x11c] sm:$0xf] %v1796
        %1925 = vst [vmem:[%s245 + $0x120] sm:$0xff] %v1797
        %1926 = vst [vmem:[%s245 + $0x128] sm:$0xf] %v1798
        %1927 = vst [vmem:[%s245 + $0x12c] sm:$0xff] %v1799
        %1928 = vst [vmem:[%s245 + $0x134] sm:$0xf] %v1800
        %1929 = vst [vmem:[%s245 + $0x138] sm:$0xff] %v1801
        %1930 = vst [vmem:[%s245 + $0x140] sm:$0xf] %v1802
        %1931 = vst [vmem:[%s245 + $0x144] sm:$0xff] %v1803
        %1932 = vst [vmem:[%s245 + $0x14c] sm:$0xf] %v1804
        %1933 = vst [vmem:[%s245 + $0x150] sm:$0xff] %v1805
        %1934 = vst [vmem:[%s245 + $0x158] sm:$0xf] %v1806
        %1935 = vst [vmem:[%s245 + $0x15c] sm:$0xff] %v1807
        %1936 = vst [vmem:[%s245 + $0x164] sm:$0xf] %v1808
        %1937 = vst [vmem:[%s245 + $0x168] sm:$0xff] %v1809
        %1938 = vst [vmem:[%s245 + $0x170] sm:$0xf] %v1810
        %1939 = vst [vmem:[%s245 + $0x174] sm:$0xff] %v1811
        %1940 = vst [vmem:[%s245 + $0x17c] sm:$0xf] %v1812
        %s1941 = sand.u32 %s119, 1
        %s1942 = scalar_lea.sflag [#allocation4], %s1941
        %s1943 = sand.u32 %s119, 1
        %s1944 = smul.addr %s1943, 384
        %s1945 = scalar_lea.vmem [#allocation8], %s1944
        // Predicated region
        $region49: #{tpu_custom_call.1} parent=35 // pred_check
          %p1946 = pneg %p129
        $region50: #{tpu_custom_call.1} parent=35 // pred_check_branch
          %1948 = sbr.rel (%p1946) target = $region52
        $region51: #{tpu_custom_call.1} parent=35 // pred_region
          %s1949 = smul.u32 32, %s22
          %s1951 = ssub.s32 6144, 6144
          %1952 = vsyncadd %s1942, %s1951
          %s1953 = smul.addr %s1949, 3
          %s1954 = smul.addr %s1953, 64
          %s1955 = scalar_lea.hbm %s4, %s1954
          %s1956 = sshll.u32 %s1945, 4
          %s1957 = int_to_ptr.vmem [resolvable:$true] %s1956
          %1962 = dma.vmem_to_hbm [thread:$0]  %s1957, 6144, %s1955, %s1942, 192, 192, 12
        $region52: #{tpu_custom_call.1} parent=35 // pred_fallthru
          _
      $region36: #{tpu_custom_call.1} parent=5 // pred_fallthru
        _
      %p1963 = scmp.le.s32.totalorder 2, %s17
      // Predicated region
      $region53: #{tpu_custom_call.1} parent=5 // pred_check
        %p1964 = pneg %p1963
      $region54: #{tpu_custom_call.1} parent=5 // pred_check_branch
        %1966 = sbr.rel (%p1964) target = $region56
      $region55: #{tpu_custom_call.1} parent=5 // pred_region
        %s1967 = ssub.s32 %s17, 2
        // Predicated region
        $region57: #{tpu_custom_call.1} parent=55 // pred_check
          %p1968 = pneg %p135
        $region58: #{tpu_custom_call.1} parent=55 // pred_check_branch
          %1970 = sbr.rel (%p1968) target = $region60
        $region59: #{tpu_custom_call.1} parent=55 // pred_region
          %s1971 = sand.u32 %s120, 1
          %s1972 = scalar_lea.sflag [#allocation4], %s1971
          %s1973 = sand.u32 %s120, 1
          %s1974 = smul.addr %s1973, 384
          %s1975 = scalar_lea.vmem [#allocation8], %s1974
          %1976 = dma.done %s1972, 6144
        $region60: #{tpu_custom_call.1} parent=55 // pred_fallthru
          _
      $region56: #{tpu_custom_call.1} parent=5 // pred_fallthru
        _
    $region6: #{tpu_custom_call.1} parent=1 // loop_footer
      %s21 = sadd.s32 1, %s17
    $region7: #{tpu_custom_call.1} parent=1 // loop_footer_branch
      %16 = sbr.rel target = $region3
    $region8: #{tpu_custom_call.1} parent=1 // loop_exit
      _
    %1977 = vsyncpa [#allocation3], 1
    %s1978 = scalar_lea.sflag [#allocation3], 1
    %1979 = vsyncpa %s1978, 1
    %1980 = vsyncpa [#allocation6], 1
    %1981 = vsyncpa [#allocation4], 1
    %s1982 = scalar_lea.sflag [#allocation4], 1
    %1983 = vsyncpa %s1982, 1

</llo_original>
